<compile_context>
chip_gen: v7x
topology: tpu7x:2x2x1
jax: 0.10.0
libtpu: 0.0.40
codegen_flags: <defaults>
</compile_context>

<pallas_src>
import math
import functools

import jax
import jax.numpy as jnp
from jax.experimental import pallas as pl
from jax.experimental.pallas import tpu as pltpu


PARAM_KEYS = ("wq", "wk", "wv", "bq", "bk", "bv", "wo", "bo",
              "ln1_g", "ln1_b", "w1", "b1", "w2", "b2", "ln2_g", "ln2_b")


# ----------------------------------------------------------------------------
# Kernel: one encoder layer per grid step; activation carried in the output block
# ----------------------------------------------------------------------------
def transformer_layer_kernel(x_ref, pe_ref, mask_ref,
                             wq_ref, wk_ref, wv_ref, bq_ref, bk_ref, bv_ref,
                             wo_ref, bo_ref, ln1g_ref, ln1b_ref,
                             w1_ref, b1_ref, w2_ref, b2_ref, ln2g_ref, ln2b_ref,
                             o_ref, *, nhead, scale, eps, approx_recip):
    N, S, E = x_ref.shape
    hd = E // nhead
    f32, bf16 = jnp.float32, jnp.bfloat16
    l = pl.program_id(0)

    def layernorm(t, g, b):                    # f32 statistics (v5e-safe VPU/EUP math)
        mu = jnp.mean(t, axis=-1, keepdims=True)
        var = jnp.mean((t - mu) ** 2, axis=-1, keepdims=True)
        return (t - mu) * jax.lax.rsqrt(var + eps) * g + b

    def mm(a_bf16, w_ref_l, b_ref_l=None):     # (rows, k) @ (k, n): bf16 MXU, f32 acc
        out = jnp.dot(a_bf16, w_ref_l[0], preferred_element_type=f32)
        if b_ref_l is not None:
            out = out + b_ref_l[0]
        return out

    # --- layer 0: initialize the resident activation (o_ref doubles as the layer carry) ---
    @pl.when(l == 0)
    def _():
        # NOTE: the PyTorch module adds pe of shape (1, max_len, E) to x of shape (S, N, E),
        # so broadcasting requires max_len == N and indexes pe by the BATCH dim; we mirror
        # that exactly: pe[n] is added to every position s of batch element n.
        o_ref[...] = x_ref[...] * scale + pe_ref[...][:, None, :]

    x = o_ref[...]                             # (N, S, E) f32, carried across grid steps
    xf = x.reshape(N * S, E)
    xb = xf.astype(bf16)                       # activation cast to bf16 exactly once

    # --- fused QKV projections: full-width (N*S, E) @ (E, E); 1/sqrt(hd) folded into wq/bq -
    q = mm(xb, wq_ref, bq_ref).astype(bf16).reshape(N, S, E)
    k = mm(xb, wk_ref, bk_ref).astype(bf16).reshape(N, S, E)
    v = mm(xb, wv_ref, bv_ref).astype(bf16).reshape(N, S, E)

    mask = mask_ref[...]                       # (S, S); broadcast-added, never tiled to (B,S,S)

    # --- per-head attention core: static lane slices + 3-D batched einsums (batch = N) -----
    ctx_heads = []
    for h in range(nhead):                     # nhead tiny; hd << 128 so per-head views are
        sl = slice(h * hd, (h + 1) * hd)       # unavoidably sub-lane-width at these dims.
        qh, kh, vh = q[:, :, sl], k[:, :, sl], v[:, :, sl]            # (N, S, hd) bf16
        s = jnp.einsum("nqd,nkd->nqk", qh, kh,
                       preferred_element_type=f32) + mask              # (N, S, S) f32
        s = s - jnp.max(s, axis=-1, keepdims=True)
        p = jnp.exp(s)
        denom = jnp.sum(p, axis=-1, keepdims=True)
        if approx_recip:
            p = p * pl.reciprocal(denom, approx=True)
        else:
            p = p / denom
        ctx_heads.append(jnp.einsum("nqk,nkd->nqd", p.astype(bf16), vh,
                                    preferred_element_type=f32))        # (N, S, hd) f32
    ctx = jnp.concatenate(ctx_heads, axis=-1).reshape(N * S, E)         # head-major concat

    # --- fused output projection: single (N*S, E) @ (E, E) (no per-head matmul / sum) ------
    attn = mm(ctx.astype(bf16), wo_ref, bo_ref)                         # (N*S, E) f32

    # --- residual + LayerNorm 1 ---
    y = layernorm(xf + attn, ln1g_ref[0], ln1b_ref[0])                  # (N*S, E) f32

    # --- feed-forward (relu) ---
    h1 = jnp.maximum(mm(y.astype(bf16), w1_ref, b1_ref), 0.0)           # (N*S, nhid) f32
    ff = mm(h1.astype(bf16), w2_ref, b2_ref)                            # (N*S, E)   f32

    # --- residual + LayerNorm 2 -> carried activation / final output ---
    o_ref[...] = layernorm(y + ff, ln2g_ref[0], ln2b_ref[0]).reshape(N, S, E)


# ----------------------------------------------------------------------------
# Wrapper: one pallas_call, grid over layers, per-layer weight streaming
# ----------------------------------------------------------------------------
def transformer_forward(src, src_mask, pe, packed, embed_size, nhead, approx_recip=True):
    S, N, E = src.shape
    L = packed["wq"].shape[0]

    # Layout plumbing in the wrapper (tiny XLA transpose) so the kernel sees a lane-dense
    # (N, S, E)/(N*S, E) activation slab instead of doing strided per-batch stores in-kernel.
    x_nse = jnp.transpose(src, (1, 0, 2))                               # (N, S, E)

    kern = functools.partial(transformer_layer_kernel, nhead=nhead,
                             scale=math.sqrt(embed_size), eps=1e-5,
                             approx_recip=approx_recip)

    def stacked_spec(arr):  # stream one layer's slab per grid step (double-buffered)
        return pl.BlockSpec((1,) + arr.shape[1:], lambda l: (l, 0, 0))

    grid_spec = pltpu.PrefetchScalarGridSpec(
        num_scalar_prefetch=0,
        grid=(L,),                                                      # one step per layer
        in_specs=[
            pl.BlockSpec((N, S, E), lambda l: (0, 0, 0)),               # x   (fetched once)
            pl.BlockSpec((N, E),    lambda l: (0, 0)),                  # pe
            pl.BlockSpec((S, S),    lambda l: (0, 0)),                  # additive causal mask
        ] + [stacked_spec(packed[k_]) for k_ in PARAM_KEYS],
        out_specs=pl.BlockSpec((N, S, E), lambda l: (0, 0, 0)),         # resident carry
    )

    out_nse = pl.pallas_call(
        kern,
        out_shape=jax.ShapeDtypeStruct((N, S, E), jnp.float32),
        grid_spec=grid_spec,
        compiler_params=pltpu.CompilerParams(
            dimension_semantics=("arbitrary",),      # layer axis is a sequential carry
            vmem_limit_bytes=32 * 1024 * 1024),
    )(x_nse, pe, src_mask, *[packed[k_] for k_ in PARAM_KEYS])

    return jnp.transpose(out_nse, (1, 0, 2))                            # back to (S, N, E)


# ----------------------------------------------------------------------------
# Host-side parameter prep: transpose to (in, out), fold 1/sqrt(hd), bf16, stack over L
# ----------------------------------------------------------------------------
def prep_kernel_params(layer_params, nhead):
    E = layer_params[0]["wq"].shape[0]
    hd = E // nhead
    qscale = 1.0 / math.sqrt(hd)

    def per_layer(p):
        return dict(
            wq=(p["wq"].T * qscale).astype(jnp.bfloat16),   # (E_in, E_out) head-major cols
            wk=p["wk"].T.astype(jnp.bfloat16),
            wv=p["wv"].T.astype(jnp.bfloat16),
            bq=(p["bq"] * qscale).reshape(1, E),
            bk=p["bk"].reshape(1, E),
            bv=p["bv"].reshape(1, E),
            wo=p["wo"].T.astype(jnp.bfloat16),              # rows head-major = concat(ctx_h)
            bo=p["bo"].reshape(1, E),
            ln1_g=p["ln1_g"].reshape(1, E), ln1_b=p["ln1_b"].reshape(1, E),
            w1=p["w1"].T.astype(jnp.bfloat16),              # (E, nhid)
            b1=p["b1"].reshape(1, -1),
            w2=p["w2"].T.astype(jnp.bfloat16),              # (nhid, E)
            b2=p["b2"].reshape(1, E),
            ln2_g=p["ln2_g"].reshape(1, E), ln2_b=p["ln2_b"].reshape(1, E),
        )

    per = [per_layer(p) for p in layer_params]
    return {k: jnp.stack([d[k] for d in per], axis=0) for k in PARAM_KEYS}


# ----------------------------------------------------------------------------
# Deterministic buffers / params (glue)
# ----------------------------------------------------------------------------
def make_positional_encoding(max_len, d_model):
    position = jnp.arange(max_len, dtype=jnp.float32)[:, None]
    div_term = jnp.exp(jnp.arange(0, d_model, 2, dtype=jnp.float32) *
                       (-math.log(10000.0) / d_model))
    ang = position * div_term
    pe = jnp.zeros((max_len, d_model), jnp.float32)
    pe = pe.at[:, 0::2].set(jnp.sin(ang))
    pe = pe.at[:, 1::2].set(jnp.cos(ang))
    return pe                                               # (max_len, d_model)


def square_subsequent_mask(sz):
    # 0 on/below diagonal, -inf above (matches generate_square_subsequent_mask)
    return jnp.triu(jnp.full((sz, sz), float("-inf"), jnp.float32), k=1)


def init_params(key, embed, nhead, nhid, nlayers):
    layers = []
    std = 0.05
    for _ in range(nlayers):
        key, *ks = jax.random.split(key, 13)
        rnd = lambda k, shape: jax.random.normal(k, shape, jnp.float32) * std
        layers.append(dict(
            wq=rnd(ks[0], (embed, embed)), bq=rnd(ks[1], (embed,)),
            wk=rnd(ks[2], (embed, embed)), bk=rnd(ks[3], (embed,)),
            wv=rnd(ks[4], (embed, embed)), bv=rnd(ks[5], (embed,)),
            wo=rnd(ks[6], (embed, embed)), bo=rnd(ks[7], (embed,)),
            w1=rnd(ks[8], (nhid, embed)), b1=rnd(ks[9], (nhid,)),
            w2=rnd(ks[10], (embed, nhid)), b2=rnd(ks[11], (embed,)),
            ln1_g=jnp.ones((embed,), jnp.float32), ln1_b=jnp.zeros((embed,), jnp.float32),
            ln2_g=jnp.ones((embed,), jnp.float32), ln2_b=jnp.zeros((embed,), jnp.float32),
        ))
    return layers


# ----------------------------------------------------------------------------
# Pure-JAX reference (PyTorch-faithful multihead math; mxu_dtype picks matmul-operand
# precision so we can check both the kernel's bf16 MXU policy and the exact f32 math).
# ----------------------------------------------------------------------------
def _layernorm(x, g, b, eps=1e-5):
    mu = jnp.mean(x, axis=-1, keepdims=True)
    var = jnp.mean((x - mu) ** 2, axis=-1, keepdims=True)
    return (x - mu) * jax.lax.rsqrt(var + eps) * g + b


def reference_forward(src, mask, pe, layers, embed, nhead, mxu_dtype=jnp.float32):
    def mm(a, w):
        return jnp.dot(a.astype(mxu_dtype), w.astype(mxu_dtype),
                       preferred_element_type=jnp.float32)

    x = jnp.transpose(src, (1, 0, 2)) * math.sqrt(embed) + pe[:, None, :]
    N, S, E = x.shape
    hd = E // nhead
    for p in layers:
        xf = x.reshape(N * S, E)

        def heads(w, b):
            t = (mm(xf, w.T) + b).reshape(N, S, nhead, hd)
            return jnp.transpose(t, (0, 2, 1, 3))           # (N, nh, S, hd)

        q, k, v = heads(p["wq"], p["bq"]), heads(p["wk"], p["bk"]), heads(p["wv"], p["bv"])
        s = jnp.einsum("nhqd,nhkd->nhqk", (q / math.sqrt(hd)).astype(mxu_dtype),
                       k.astype(mxu_dtype), preferred_element_type=jnp.float32) + mask
        a = jax.nn.softmax(s, axis=-1)
        ctx = jnp.einsum("nhqk,nhkd->nhqd", a.astype(mxu_dtype), v.astype(mxu_dtype),
                         preferred_element_type=jnp.float32)
        ctx = jnp.transpose(ctx, (0, 2, 1, 3)).reshape(N * S, E)
        attn = mm(ctx, p["wo"].T) + p["bo"]
        y = _layernorm(xf + attn, p["ln1_g"], p["ln1_b"])
        ff = mm(jnp.maximum(mm(y, p["w1"].T) + p["b1"], 0.0), p["w2"].T) + p["b2"]
        x = _layernorm(y + ff, p["ln2_g"], p["ln2_b"]).reshape(N, S, E)
    return jnp.transpose(x, (1, 0, 2))


# ----------------------------------------------------------------------------
if __name__ == "__main__":
    # Small shapes: seq=8, batch=2, embed=32, nhead=4, nhid=64, nlayers=2.
    S, N, E = 8, 2, 32
    nhead, nhid, nlayers = 4, 64, 2
    max_len = N   # required so x (S,N,E) + pe (1,max_len,E) broadcasts, as in the module

    key = jax.random.PRNGKey(0)
    key, ksrc = jax.random.split(key)
    src = jax.random.normal(ksrc, (S, N, E), jnp.float32)
    src_mask = square_subsequent_mask(S)
    pe = make_positional_encoding(max_len, E)               # (N, E)
    raw_layers = init_params(key, E, nhead, nhid, nlayers)
    packed = prep_kernel_params(raw_layers, nhead)

    out = transformer_forward(src, src_mask, pe, packed, E, nhead)
    out = jax.block_until_ready(out)

    assert out.shape == (S, N, E)
    assert bool(jnp.all(jnp.isfinite(out)))

    # 1) Reference mirroring the kernel's precision policy (bf16 MXU operands, f32 acc).
    ref_bf = reference_forward(src, src_mask, pe, raw_layers, E, nhead, mxu_dtype=jnp.bfloat16)
    err_bf = float(jnp.max(jnp.abs(out - ref_bf)))
    assert err_bf < 5e-2, f"bf16-policy mismatch: {err_bf}"

    # 2) Sanity bound against the module-exact pure-f32 math.
    ref_f32 = reference_forward(src, src_mask, pe, raw_layers, E, nhead, mxu_dtype=jnp.float32)
    err_f32 = float(jnp.max(jnp.abs(out - ref_f32)))
    assert err_f32 < 1.5e-1, f"f32 mismatch: {err_f32}"

    print("KERNEL_OK")
</pallas_src>

<mosaic_0001>
module attributes {stable_mosaic.version = 11 : i64} {
  func.func @transformer_layer_kernel(%arg0: i32, %arg1: memref<2x8x32xf32, #tpu.memory_space<vmem>>, %arg2: memref<2x32xf32, #tpu.memory_space<vmem>>, %arg3: memref<8x8xf32, #tpu.memory_space<vmem>>, %arg4: memref<1x32x32xbf16, #tpu.memory_space<vmem>>, %arg5: memref<1x32x32xbf16, #tpu.memory_space<vmem>>, %arg6: memref<1x32x32xbf16, #tpu.memory_space<vmem>>, %arg7: memref<1x1x32xf32, #tpu.memory_space<vmem>>, %arg8: memref<1x1x32xf32, #tpu.memory_space<vmem>>, %arg9: memref<1x1x32xf32, #tpu.memory_space<vmem>>, %arg10: memref<1x32x32xbf16, #tpu.memory_space<vmem>>, %arg11: memref<1x1x32xf32, #tpu.memory_space<vmem>>, %arg12: memref<1x1x32xf32, #tpu.memory_space<vmem>>, %arg13: memref<1x1x32xf32, #tpu.memory_space<vmem>>, %arg14: memref<1x32x64xbf16, #tpu.memory_space<vmem>>, %arg15: memref<1x1x64xf32, #tpu.memory_space<vmem>>, %arg16: memref<1x64x32xbf16, #tpu.memory_space<vmem>>, %arg17: memref<1x1x32xf32, #tpu.memory_space<vmem>>, %arg18: memref<1x1x32xf32, #tpu.memory_space<vmem>>, %arg19: memref<1x1x32xf32, #tpu.memory_space<vmem>>, %arg20: memref<2x8x32xf32, #tpu.memory_space<vmem>>) attributes {dimension_semantics = [#tpu.dimension_semantics<arbitrary>], iteration_bounds = array<i64: 2>, scalar_prefetch = 0 : i64, scratch_operands = 0 : i64, tpu.core_type = #tpu.core_type<tc>, window_params = [{pipeline_mode = #tpu.pipeline_mode<synchronous>, transform_indices = @transform_0, window_bounds = array<i64: 2, 8, 32>}, {pipeline_mode = #tpu.pipeline_mode<synchronous>, transform_indices = @transform_1, window_bounds = array<i64: 2, 32>}, {pipeline_mode = #tpu.pipeline_mode<synchronous>, transform_indices = @transform_2, window_bounds = array<i64: 8, 8>}, {transform_indices = @transform_3, window_bounds = array<i64: 1, 32, 32>}, {transform_indices = @transform_4, window_bounds = array<i64: 1, 32, 32>}, {transform_indices = @transform_5, window_bounds = array<i64: 1, 32, 32>}, {transform_indices = @transform_6, window_bounds = array<i64: 1, 1, 32>}, {transform_indices = @transform_7, window_bounds = array<i64: 1, 1, 32>}, {transform_indices = @transform_8, window_bounds = array<i64: 1, 1, 32>}, {transform_indices = @transform_9, window_bounds = array<i64: 1, 32, 32>}, {transform_indices = @transform_10, window_bounds = array<i64: 1, 1, 32>}, {transform_indices = @transform_11, window_bounds = array<i64: 1, 1, 32>}, {transform_indices = @transform_12, window_bounds = array<i64: 1, 1, 32>}, {transform_indices = @transform_13, window_bounds = array<i64: 1, 32, 64>}, {transform_indices = @transform_14, window_bounds = array<i64: 1, 1, 64>}, {transform_indices = @transform_15, window_bounds = array<i64: 1, 64, 32>}, {transform_indices = @transform_16, window_bounds = array<i64: 1, 1, 32>}, {transform_indices = @transform_17, window_bounds = array<i64: 1, 1, 32>}, {transform_indices = @transform_18, window_bounds = array<i64: 1, 1, 32>}, {pipeline_mode = #tpu.pipeline_mode<synchronous>, transform_indices = @transform_19, window_bounds = array<i64: 2, 8, 32>}]} {
    %c0_i32 = arith.constant 0 : i32
    %0 = arith.cmpi eq, %arg0, %c0_i32 : i32
    %1 = arith.extui %0 : i1 to i32
    %c0_i32_0 = arith.constant 0 : i32
    %2 = arith.cmpi ne, %1, %c0_i32_0 : i32
    scf.if %2 {
      %c0_88 = arith.constant 0 : index
      %c0_89 = arith.constant 0 : index
      %c0_90 = arith.constant 0 : index
      %194 = vector.load %arg1[%c0_88, %c0_89, %c0_90] : memref<2x8x32xf32, #tpu.memory_space<vmem>>, vector<2x8x32xf32>
      %cst_91 = arith.constant 5.65685415 : f32
      %195 = vector.broadcast %cst_91 : f32 to vector<2x8x32xf32>
      %196 = arith.mulf %194, %195 : vector<2x8x32xf32>
      %c0_92 = arith.constant 0 : index
      %c0_93 = arith.constant 0 : index
      %197 = vector.load %arg2[%c0_92, %c0_93] : memref<2x32xf32, #tpu.memory_space<vmem>>, vector<2x32xf32>
      %198 = vector.shape_cast %197 : vector<2x32xf32> to vector<2x1x32xf32>
      %199 = vector.broadcast %198 : vector<2x1x32xf32> to vector<2x8x32xf32>
      %200 = arith.addf %196, %199 : vector<2x8x32xf32>
      %c0_94 = arith.constant 0 : index
      %c0_95 = arith.constant 0 : index
      %c0_96 = arith.constant 0 : index
      %201 = vector.load %arg20[%c0_94, %c0_95, %c0_96] : memref<2x8x32xf32, #tpu.memory_space<vmem>>, vector<2x8x32xf32>
      tpu.vector_store %arg20[%c0_94, %c0_95, %c0_96], %200 {strides = array<i32>} : memref<2x8x32xf32, #tpu.memory_space<vmem>>, vector<2x8x32xf32>,
    } else {
    }
    %c0 = arith.constant 0 : index
    %c0_1 = arith.constant 0 : index
    %c0_2 = arith.constant 0 : index
    %3 = vector.load %arg20[%c0, %c0_1, %c0_2] : memref<2x8x32xf32, #tpu.memory_space<vmem>>, vector<2x8x32xf32>
    %4 = vector.shape_cast %3 : vector<2x8x32xf32> to vector<16x32xf32>
    %5 = arith.truncf %4 : vector<16x32xf32> to vector<16x32xbf16>
    %c0_3 = arith.constant 0 : index
    %c0_4 = arith.constant 0 : index
    %c0_5 = arith.constant 0 : index
    %6 = vector.load %arg4[%c0_3, %c0_4, %c0_5] : memref<1x32x32xbf16, #tpu.memory_space<vmem>>, vector<1x32x32xbf16>
    %7 = vector.shape_cast %6 : vector<1x32x32xbf16> to vector<32x32xbf16>
    %cst = arith.constant dense<0.000000e+00> : vector<16x32xf32>
    %8 = tpu.matmul %5, %7, %cst {dimension_numbers = #tpu.dot_dimension_numbers<[1], [0], [0], [1], [0, 0, 1, 1], [], []>} : vector<16x32xbf16>, vector<32x32xbf16>, vector<16x32xf32> -> vector<16x32xf32>
    %c0_6 = arith.constant 0 : index
    %c0_7 = arith.constant 0 : index
    %c0_8 = arith.constant 0 : index
    %9 = vector.load %arg7[%c0_6, %c0_7, %c0_8] : memref<1x1x32xf32, #tpu.memory_space<vmem>>, vector<1x1x32xf32>
    %10 = vector.shape_cast %9 : vector<1x1x32xf32> to vector<1x32xf32>
    %11 = vector.broadcast %10 : vector<1x32xf32> to vector<16x32xf32>
    %12 = arith.addf %8, %11 : vector<16x32xf32>
    %13 = arith.truncf %12 : vector<16x32xf32> to vector<16x32xbf16>
    %14 = vector.shape_cast %13 : vector<16x32xbf16> to vector<2x8x32xbf16>
    %c0_9 = arith.constant 0 : index
    %c0_10 = arith.constant 0 : index
    %c0_11 = arith.constant 0 : index
    %15 = vector.load %arg5[%c0_9, %c0_10, %c0_11] : memref<1x32x32xbf16, #tpu.memory_space<vmem>>, vector<1x32x32xbf16>
    %16 = vector.shape_cast %15 : vector<1x32x32xbf16> to vector<32x32xbf16>
    %cst_12 = arith.constant dense<0.000000e+00> : vector<16x32xf32>
    %17 = tpu.matmul %5, %16, %cst_12 {dimension_numbers = #tpu.dot_dimension_numbers<[1], [0], [0], [1], [0, 0, 1, 1], [], []>} : vector<16x32xbf16>, vector<32x32xbf16>, vector<16x32xf32> -> vector<16x32xf32>
    %c0_13 = arith.constant 0 : index
    %c0_14 = arith.constant 0 : index
    %c0_15 = arith.constant 0 : index
    %18 = vector.load %arg8[%c0_13, %c0_14, %c0_15] : memref<1x1x32xf32, #tpu.memory_space<vmem>>, vector<1x1x32xf32>
    %19 = vector.shape_cast %18 : vector<1x1x32xf32> to vector<1x32xf32>
    %20 = vector.broadcast %19 : vector<1x32xf32> to vector<16x32xf32>
    %21 = arith.addf %17, %20 : vector<16x32xf32>
    %22 = arith.truncf %21 : vector<16x32xf32> to vector<16x32xbf16>
    %23 = vector.shape_cast %22 : vector<16x32xbf16> to vector<2x8x32xbf16>
    %c0_16 = arith.constant 0 : index
    %c0_17 = arith.constant 0 : index
    %c0_18 = arith.constant 0 : index
    %24 = vector.load %arg6[%c0_16, %c0_17, %c0_18] : memref<1x32x32xbf16, #tpu.memory_space<vmem>>, vector<1x32x32xbf16>
    %25 = vector.shape_cast %24 : vector<1x32x32xbf16> to vector<32x32xbf16>
    %cst_19 = arith.constant dense<0.000000e+00> : vector<16x32xf32>
    %26 = tpu.matmul %5, %25, %cst_19 {dimension_numbers = #tpu.dot_dimension_numbers<[1], [0], [0], [1], [0, 0, 1, 1], [], []>} : vector<16x32xbf16>, vector<32x32xbf16>, vector<16x32xf32> -> vector<16x32xf32>
    %c0_20 = arith.constant 0 : index
    %c0_21 = arith.constant 0 : index
    %c0_22 = arith.constant 0 : index
    %27 = vector.load %arg9[%c0_20, %c0_21, %c0_22] : memref<1x1x32xf32, #tpu.memory_space<vmem>>, vector<1x1x32xf32>
    %28 = vector.shape_cast %27 : vector<1x1x32xf32> to vector<1x32xf32>
    %29 = vector.broadcast %28 : vector<1x32xf32> to vector<16x32xf32>
    %30 = arith.addf %26, %29 : vector<16x32xf32>
    %31 = arith.truncf %30 : vector<16x32xf32> to vector<16x32xbf16>
    %32 = vector.shape_cast %31 : vector<16x32xbf16> to vector<2x8x32xbf16>
    %c0_23 = arith.constant 0 : index
    %c0_24 = arith.constant 0 : index
    %33 = vector.load %arg3[%c0_23, %c0_24] : memref<8x8xf32, #tpu.memory_space<vmem>>, vector<8x8xf32>
    %34 = vector.extract_strided_slice %14 {offsets = [0, 0, 0], sizes = [2, 8, 8], strides = [1, 1, 1]} : vector<2x8x32xbf16> to vector<2x8x8xbf16>
    %35 = vector.extract_strided_slice %23 {offsets = [0, 0, 0], sizes = [2, 8, 8], strides = [1, 1, 1]} : vector<2x8x32xbf16> to vector<2x8x8xbf16>
    %36 = vector.extract_strided_slice %32 {offsets = [0, 0, 0], sizes = [2, 8, 8], strides = [1, 1, 1]} : vector<2x8x32xbf16> to vector<2x8x8xbf16>
    "tpu.trace_start"() <{level = 10 : i32, message = "nqd,nkd->nqk"}> : () -> ()
    %cst_25 = arith.constant dense<0.000000e+00> : vector<2x8x8xf32>
    %37 = tpu.matmul %34, %35, %cst_25 {dimension_numbers = #tpu.dot_dimension_numbers<[2], [2], [1], [1], [0, 0, 0, 1, 1, 1], [0], [0]>} : vector<2x8x8xbf16>, vector<2x8x8xbf16>, vector<2x8x8xf32> -> vector<2x8x8xf32>
    "tpu.trace_stop"() : () -> ()
    %38 = vector.shape_cast %33 : vector<8x8xf32> to vector<1x8x8xf32>
    %39 = vector.broadcast %38 : vector<1x8x8xf32> to vector<2x8x8xf32>
    %40 = arith.addf %37, %39 : vector<2x8x8xf32>
    %cst_26 = arith.constant dense<0xFF800000> : vector<2x8xf32>
    %41 = vector.multi_reduction <maximumf>, %40, %cst_26 [2] : vector<2x8x8xf32> to vector<2x8xf32>
    %42 = vector.shape_cast %41 : vector<2x8xf32> to vector<2x8x1xf32>
    %43 = vector.broadcast %42 : vector<2x8x1xf32> to vector<2x8x8xf32>
    %44 = arith.subf %40, %43 : vector<2x8x8xf32>
    %45 = math.exp %44 : vector<2x8x8xf32>
    %cst_27 = arith.constant dense<0.000000e+00> : vector<2x8xf32>
    %46 = vector.multi_reduction <add>, %45, %cst_27 [2] : vector<2x8x8xf32> to vector<2x8xf32>
    %47 = vector.shape_cast %46 : vector<2x8xf32> to vector<2x8x1xf32>
    %48 = tpu.reciprocal %47 {approx = true} : vector<2x8x1xf32> -> vector<2x8x1xf32>
    %49 = vector.broadcast %48 : vector<2x8x1xf32> to vector<2x8x8xf32>
    %50 = arith.mulf %45, %49 : vector<2x8x8xf32>
    %51 = arith.truncf %50 : vector<2x8x8xf32> to vector<2x8x8xbf16>
    "tpu.trace_start"() <{level = 10 : i32, message = "nqk,nkd->nqd"}> : () -> ()
    %cst_28 = arith.constant dense<0.000000e+00> : vector<2x8x8xf32>
    %52 = tpu.matmul %51, %36, %cst_28 {dimension_numbers = #tpu.dot_dimension_numbers<[2], [1], [1], [2], [0, 0, 0, 1, 1, 2], [0], [0]>} : vector<2x8x8xbf16>, vector<2x8x8xbf16>, vector<2x8x8xf32> -> vector<2x8x8xf32>
    "tpu.trace_stop"() : () -> ()
    %53 = vector.extract_strided_slice %14 {offsets = [0, 0, 8], sizes = [2, 8, 8], strides = [1, 1, 1]} : vector<2x8x32xbf16> to vector<2x8x8xbf16>
    %54 = vector.extract_strided_slice %23 {offsets = [0, 0, 8], sizes = [2, 8, 8], strides = [1, 1, 1]} : vector<2x8x32xbf16> to vector<2x8x8xbf16>
    %55 = vector.extract_strided_slice %32 {offsets = [0, 0, 8], sizes = [2, 8, 8], strides = [1, 1, 1]} : vector<2x8x32xbf16> to vector<2x8x8xbf16>
    "tpu.trace_start"() <{level = 10 : i32, message = "nqd,nkd->nqk"}> : () -> ()
    %cst_29 = arith.constant dense<0.000000e+00> : vector<2x8x8xf32>
    %56 = tpu.matmul %53, %54, %cst_29 {dimension_numbers = #tpu.dot_dimension_numbers<[2], [2], [1], [1], [0, 0, 0, 1, 1, 1], [0], [0]>} : vector<2x8x8xbf16>, vector<2x8x8xbf16>, vector<2x8x8xf32> -> vector<2x8x8xf32>
    "tpu.trace_stop"() : () -> ()
    %57 = vector.shape_cast %33 : vector<8x8xf32> to vector<1x8x8xf32>
    %58 = vector.broadcast %57 : vector<1x8x8xf32> to vector<2x8x8xf32>
    %59 = arith.addf %56, %58 : vector<2x8x8xf32>
    %cst_30 = arith.constant dense<0xFF800000> : vector<2x8xf32>
    %60 = vector.multi_reduction <maximumf>, %59, %cst_30 [2] : vector<2x8x8xf32> to vector<2x8xf32>
    %61 = vector.shape_cast %60 : vector<2x8xf32> to vector<2x8x1xf32>
    %62 = vector.broadcast %61 : vector<2x8x1xf32> to vector<2x8x8xf32>
    %63 = arith.subf %59, %62 : vector<2x8x8xf32>
    %64 = math.exp %63 : vector<2x8x8xf32>
    %cst_31 = arith.constant dense<0.000000e+00> : vector<2x8xf32>
    %65 = vector.multi_reduction <add>, %64, %cst_31 [2] : vector<2x8x8xf32> to vector<2x8xf32>
    %66 = vector.shape_cast %65 : vector<2x8xf32> to vector<2x8x1xf32>
    %67 = tpu.reciprocal %66 {approx = true} : vector<2x8x1xf32> -> vector<2x8x1xf32>
    %68 = vector.broadcast %67 : vector<2x8x1xf32> to vector<2x8x8xf32>
    %69 = arith.mulf %64, %68 : vector<2x8x8xf32>
    %70 = arith.truncf %69 : vector<2x8x8xf32> to vector<2x8x8xbf16>
    "tpu.trace_start"() <{level = 10 : i32, message = "nqk,nkd->nqd"}> : () -> ()
    %cst_32 = arith.constant dense<0.000000e+00> : vector<2x8x8xf32>
    %71 = tpu.matmul %70, %55, %cst_32 {dimension_numbers = #tpu.dot_dimension_numbers<[2], [1], [1], [2], [0, 0, 0, 1, 1, 2], [0], [0]>} : vector<2x8x8xbf16>, vector<2x8x8xbf16>, vector<2x8x8xf32> -> vector<2x8x8xf32>
    "tpu.trace_stop"() : () -> ()
    %72 = vector.extract_strided_slice %14 {offsets = [0, 0, 16], sizes = [2, 8, 8], strides = [1, 1, 1]} : vector<2x8x32xbf16> to vector<2x8x8xbf16>
    %73 = vector.extract_strided_slice %23 {offsets = [0, 0, 16], sizes = [2, 8, 8], strides = [1, 1, 1]} : vector<2x8x32xbf16> to vector<2x8x8xbf16>
    %74 = vector.extract_strided_slice %32 {offsets = [0, 0, 16], sizes = [2, 8, 8], strides = [1, 1, 1]} : vector<2x8x32xbf16> to vector<2x8x8xbf16>
    "tpu.trace_start"() <{level = 10 : i32, message = "nqd,nkd->nqk"}> : () -> ()
    %cst_33 = arith.constant dense<0.000000e+00> : vector<2x8x8xf32>
    %75 = tpu.matmul %72, %73, %cst_33 {dimension_numbers = #tpu.dot_dimension_numbers<[2], [2], [1], [1], [0, 0, 0, 1, 1, 1], [0], [0]>} : vector<2x8x8xbf16>, vector<2x8x8xbf16>, vector<2x8x8xf32> -> vector<2x8x8xf32>
    "tpu.trace_stop"() : () -> ()
    %76 = vector.shape_cast %33 : vector<8x8xf32> to vector<1x8x8xf32>
    %77 = vector.broadcast %76 : vector<1x8x8xf32> to vector<2x8x8xf32>
    %78 = arith.addf %75, %77 : vector<2x8x8xf32>
    %cst_34 = arith.constant dense<0xFF800000> : vector<2x8xf32>
    %79 = vector.multi_reduction <maximumf>, %78, %cst_34 [2] : vector<2x8x8xf32> to vector<2x8xf32>
    %80 = vector.shape_cast %79 : vector<2x8xf32> to vector<2x8x1xf32>
    %81 = vector.broadcast %80 : vector<2x8x1xf32> to vector<2x8x8xf32>
    %82 = arith.subf %78, %81 : vector<2x8x8xf32>
    %83 = math.exp %82 : vector<2x8x8xf32>
    %cst_35 = arith.constant dense<0.000000e+00> : vector<2x8xf32>
    %84 = vector.multi_reduction <add>, %83, %cst_35 [2] : vector<2x8x8xf32> to vector<2x8xf32>
    %85 = vector.shape_cast %84 : vector<2x8xf32> to vector<2x8x1xf32>
    %86 = tpu.reciprocal %85 {approx = true} : vector<2x8x1xf32> -> vector<2x8x1xf32>
    %87 = vector.broadcast %86 : vector<2x8x1xf32> to vector<2x8x8xf32>
    %88 = arith.mulf %83, %87 : vector<2x8x8xf32>
    %89 = arith.truncf %88 : vector<2x8x8xf32> to vector<2x8x8xbf16>
    "tpu.trace_start"() <{level = 10 : i32, message = "nqk,nkd->nqd"}> : () -> ()
    %cst_36 = arith.constant dense<0.000000e+00> : vector<2x8x8xf32>
    %90 = tpu.matmul %89, %74, %cst_36 {dimension_numbers = #tpu.dot_dimension_numbers<[2], [1], [1], [2], [0, 0, 0, 1, 1, 2], [0], [0]>} : vector<2x8x8xbf16>, vector<2x8x8xbf16>, vector<2x8x8xf32> -> vector<2x8x8xf32>
    "tpu.trace_stop"() : () -> ()
    %91 = vector.extract_strided_slice %14 {offsets = [0, 0, 24], sizes = [2, 8, 8], strides = [1, 1, 1]} : vector<2x8x32xbf16> to vector<2x8x8xbf16>
    %92 = vector.extract_strided_slice %23 {offsets = [0, 0, 24], sizes = [2, 8, 8], strides = [1, 1, 1]} : vector<2x8x32xbf16> to vector<2x8x8xbf16>
    %93 = vector.extract_strided_slice %32 {offsets = [0, 0, 24], sizes = [2, 8, 8], strides = [1, 1, 1]} : vector<2x8x32xbf16> to vector<2x8x8xbf16>
    "tpu.trace_start"() <{level = 10 : i32, message = "nqd,nkd->nqk"}> : () -> ()
    %cst_37 = arith.constant dense<0.000000e+00> : vector<2x8x8xf32>
    %94 = tpu.matmul %91, %92, %cst_37 {dimension_numbers = #tpu.dot_dimension_numbers<[2], [2], [1], [1], [0, 0, 0, 1, 1, 1], [0], [0]>} : vector<2x8x8xbf16>, vector<2x8x8xbf16>, vector<2x8x8xf32> -> vector<2x8x8xf32>
    "tpu.trace_stop"() : () -> ()
    %95 = vector.shape_cast %33 : vector<8x8xf32> to vector<1x8x8xf32>
    %96 = vector.broadcast %95 : vector<1x8x8xf32> to vector<2x8x8xf32>
    %97 = arith.addf %94, %96 : vector<2x8x8xf32>
    %cst_38 = arith.constant dense<0xFF800000> : vector<2x8xf32>
    %98 = vector.multi_reduction <maximumf>, %97, %cst_38 [2] : vector<2x8x8xf32> to vector<2x8xf32>
    %99 = vector.shape_cast %98 : vector<2x8xf32> to vector<2x8x1xf32>
    %100 = vector.broadcast %99 : vector<2x8x1xf32> to vector<2x8x8xf32>
    %101 = arith.subf %97, %100 : vector<2x8x8xf32>
    %102 = math.exp %101 : vector<2x8x8xf32>
    %cst_39 = arith.constant dense<0.000000e+00> : vector<2x8xf32>
    %103 = vector.multi_reduction <add>, %102, %cst_39 [2] : vector<2x8x8xf32> to vector<2x8xf32>
    %104 = vector.shape_cast %103 : vector<2x8xf32> to vector<2x8x1xf32>
    %105 = tpu.reciprocal %104 {approx = true} : vector<2x8x1xf32> -> vector<2x8x1xf32>
    %106 = vector.broadcast %105 : vector<2x8x1xf32> to vector<2x8x8xf32>
    %107 = arith.mulf %102, %106 : vector<2x8x8xf32>
    %108 = arith.truncf %107 : vector<2x8x8xf32> to vector<2x8x8xbf16>
    "tpu.trace_start"() <{level = 10 : i32, message = "nqk,nkd->nqd"}> : () -> ()
    %cst_40 = arith.constant dense<0.000000e+00> : vector<2x8x8xf32>
    %109 = tpu.matmul %108, %93, %cst_40 {dimension_numbers = #tpu.dot_dimension_numbers<[2], [1], [1], [2], [0, 0, 0, 1, 1, 2], [0], [0]>} : vector<2x8x8xbf16>, vector<2x8x8xbf16>, vector<2x8x8xf32> -> vector<2x8x8xf32>
    "tpu.trace_stop"() : () -> ()
    %110 = tpu.concatenate %52, %71, %90, %109 in 2 : vector<2x8x8xf32>, vector<2x8x8xf32>, vector<2x8x8xf32>, vector<2x8x8xf32> -> vector<2x8x32xf32>
    %111 = vector.shape_cast %110 : vector<2x8x32xf32> to vector<16x32xf32>
    %112 = arith.truncf %111 : vector<16x32xf32> to vector<16x32xbf16>
    %c0_41 = arith.constant 0 : index
    %c0_42 = arith.constant 0 : index
    %c0_43 = arith.constant 0 : index
    %113 = vector.load %arg10[%c0_41, %c0_42, %c0_43] : memref<1x32x32xbf16, #tpu.memory_space<vmem>>, vector<1x32x32xbf16>
    %114 = vector.shape_cast %113 : vector<1x32x32xbf16> to vector<32x32xbf16>
    %cst_44 = arith.constant dense<0.000000e+00> : vector<16x32xf32>
    %115 = tpu.matmul %112, %114, %cst_44 {dimension_numbers = #tpu.dot_dimension_numbers<[1], [0], [0], [1], [0, 0, 1, 1], [], []>} : vector<16x32xbf16>, vector<32x32xbf16>, vector<16x32xf32> -> vector<16x32xf32>
    %c0_45 = arith.constant 0 : index
    %c0_46 = arith.constant 0 : index
    %c0_47 = arith.constant 0 : index
    %116 = vector.load %arg11[%c0_45, %c0_46, %c0_47] : memref<1x1x32xf32, #tpu.memory_space<vmem>>, vector<1x1x32xf32>
    %117 = vector.shape_cast %116 : vector<1x1x32xf32> to vector<1x32xf32>
    %118 = vector.broadcast %117 : vector<1x32xf32> to vector<16x32xf32>
    %119 = arith.addf %115, %118 : vector<16x32xf32>
    %120 = arith.addf %4, %119 : vector<16x32xf32>
    %c0_48 = arith.constant 0 : index
    %c0_49 = arith.constant 0 : index
    %c0_50 = arith.constant 0 : index
    %121 = vector.load %arg12[%c0_48, %c0_49, %c0_50] : memref<1x1x32xf32, #tpu.memory_space<vmem>>, vector<1x1x32xf32>
    %122 = vector.shape_cast %121 : vector<1x1x32xf32> to vector<1x32xf32>
    %c0_51 = arith.constant 0 : index
    %c0_52 = arith.constant 0 : index
    %c0_53 = arith.constant 0 : index
    %123 = vector.load %arg13[%c0_51, %c0_52, %c0_53] : memref<1x1x32xf32, #tpu.memory_space<vmem>>, vector<1x1x32xf32>
    %124 = vector.shape_cast %123 : vector<1x1x32xf32> to vector<1x32xf32>
    %cst_54 = arith.constant dense<0.000000e+00> : vector<16xf32>
    %125 = vector.multi_reduction <add>, %120, %cst_54 [1] : vector<16x32xf32> to vector<16xf32>
    %126 = vector.shape_cast %125 : vector<16xf32> to vector<16x1xf32>
    %cst_55 = arith.constant 3.200000e+01 : f32
    %127 = vector.broadcast %cst_55 : f32 to vector<16x1xf32>
    %128 = arith.divf %126, %127 : vector<16x1xf32>
    %129 = vector.broadcast %128 : vector<16x1xf32> to vector<16x32xf32>
    %130 = arith.subf %120, %129 : vector<16x32xf32>
    %131 = arith.mulf %130, %130 : vector<16x32xf32>
    %cst_56 = arith.constant dense<0.000000e+00> : vector<16xf32>
    %132 = vector.multi_reduction <add>, %131, %cst_56 [1] : vector<16x32xf32> to vector<16xf32>
    %133 = vector.shape_cast %132 : vector<16xf32> to vector<16x1xf32>
    %cst_57 = arith.constant 3.200000e+01 : f32
    %134 = vector.broadcast %cst_57 : f32 to vector<16x1xf32>
    %135 = arith.divf %133, %134 : vector<16x1xf32>
    %136 = vector.broadcast %128 : vector<16x1xf32> to vector<16x32xf32>
    %137 = arith.subf %120, %136 : vector<16x32xf32>
    %cst_58 = arith.constant 9.99999974E-6 : f32
    %138 = vector.broadcast %cst_58 : f32 to vector<16x1xf32>
    %139 = arith.addf %135, %138 : vector<16x1xf32>
    %140 = math.rsqrt %139 : vector<16x1xf32>
    %141 = vector.broadcast %140 : vector<16x1xf32> to vector<16x32xf32>
    %142 = arith.mulf %137, %141 : vector<16x32xf32>
    %143 = vector.broadcast %122 : vector<1x32xf32> to vector<16x32xf32>
    %144 = arith.mulf %142, %143 : vector<16x32xf32>
    %145 = vector.broadcast %124 : vector<1x32xf32> to vector<16x32xf32>
    %146 = arith.addf %144, %145 : vector<16x32xf32>
    %147 = arith.truncf %146 : vector<16x32xf32> to vector<16x32xbf16>
    %c0_59 = arith.constant 0 : index
    %c0_60 = arith.constant 0 : index
    %c0_61 = arith.constant 0 : index
    %148 = vector.load %arg14[%c0_59, %c0_60, %c0_61] : memref<1x32x64xbf16, #tpu.memory_space<vmem>>, vector<1x32x64xbf16>
    %149 = vector.shape_cast %148 : vector<1x32x64xbf16> to vector<32x64xbf16>
    %cst_62 = arith.constant dense<0.000000e+00> : vector<16x64xf32>
    %150 = tpu.matmul %147, %149, %cst_62 {dimension_numbers = #tpu.dot_dimension_numbers<[1], [0], [0], [1], [0, 0, 1, 1], [], []>} : vector<16x32xbf16>, vector<32x64xbf16>, vector<16x64xf32> -> vector<16x64xf32>
    %c0_63 = arith.constant 0 : index
    %c0_64 = arith.constant 0 : index
    %c0_65 = arith.constant 0 : index
    %151 = vector.load %arg15[%c0_63, %c0_64, %c0_65] : memref<1x1x64xf32, #tpu.memory_space<vmem>>, vector<1x1x64xf32>
    %152 = vector.shape_cast %151 : vector<1x1x64xf32> to vector<1x64xf32>
    %153 = vector.broadcast %152 : vector<1x64xf32> to vector<16x64xf32>
    %154 = arith.addf %150, %153 : vector<16x64xf32>
    %cst_66 = arith.constant 0.000000e+00 : f32
    %155 = vector.broadcast %cst_66 : f32 to vector<16x64xf32>
    %156 = arith.maximumf %154, %155 : vector<16x64xf32>
    %157 = arith.truncf %156 : vector<16x64xf32> to vector<16x64xbf16>
    %c0_67 = arith.constant 0 : index
    %c0_68 = arith.constant 0 : index
    %c0_69 = arith.constant 0 : index
    %158 = vector.load %arg16[%c0_67, %c0_68, %c0_69] : memref<1x64x32xbf16, #tpu.memory_space<vmem>>, vector<1x64x32xbf16>
    %159 = vector.shape_cast %158 : vector<1x64x32xbf16> to vector<64x32xbf16>
    %cst_70 = arith.constant dense<0.000000e+00> : vector<16x32xf32>
    %160 = tpu.matmul %157, %159, %cst_70 {dimension_numbers = #tpu.dot_dimension_numbers<[1], [0], [0], [1], [0, 0, 1, 1], [], []>} : vector<16x64xbf16>, vector<64x32xbf16>, vector<16x32xf32> -> vector<16x32xf32>
    %c0_71 = arith.constant 0 : index
    %c0_72 = arith.constant 0 : index
    %c0_73 = arith.constant 0 : index
    %161 = vector.load %arg17[%c0_71, %c0_72, %c0_73] : memref<1x1x32xf32, #tpu.memory_space<vmem>>, vector<1x1x32xf32>
    %162 = vector.shape_cast %161 : vector<1x1x32xf32> to vector<1x32xf32>
    %163 = vector.broadcast %162 : vector<1x32xf32> to vector<16x32xf32>
    %164 = arith.addf %160, %163 : vector<16x32xf32>
    %165 = arith.addf %146, %164 : vector<16x32xf32>
    %c0_74 = arith.constant 0 : index
    %c0_75 = arith.constant 0 : index
    %c0_76 = arith.constant 0 : index
    %166 = vector.load %arg18[%c0_74, %c0_75, %c0_76] : memref<1x1x32xf32, #tpu.memory_space<vmem>>, vector<1x1x32xf32>
    %167 = vector.shape_cast %166 : vector<1x1x32xf32> to vector<1x32xf32>
    %c0_77 = arith.constant 0 : index
    %c0_78 = arith.constant 0 : index
    %c0_79 = arith.constant 0 : index
    %168 = vector.load %arg19[%c0_77, %c0_78, %c0_79] : memref<1x1x32xf32, #tpu.memory_space<vmem>>, vector<1x1x32xf32>
    %169 = vector.shape_cast %168 : vector<1x1x32xf32> to vector<1x32xf32>
    %cst_80 = arith.constant dense<0.000000e+00> : vector<16xf32>
    %170 = vector.multi_reduction <add>, %165, %cst_80 [1] : vector<16x32xf32> to vector<16xf32>
    %171 = vector.shape_cast %170 : vector<16xf32> to vector<16x1xf32>
    %cst_81 = arith.constant 3.200000e+01 : f32
    %172 = vector.broadcast %cst_81 : f32 to vector<16x1xf32>
    %173 = arith.divf %171, %172 : vector<16x1xf32>
    %174 = vector.broadcast %173 : vector<16x1xf32> to vector<16x32xf32>
    %175 = arith.subf %165, %174 : vector<16x32xf32>
    %176 = arith.mulf %175, %175 : vector<16x32xf32>
    %cst_82 = arith.constant dense<0.000000e+00> : vector<16xf32>
    %177 = vector.multi_reduction <add>, %176, %cst_82 [1] : vector<16x32xf32> to vector<16xf32>
    %178 = vector.shape_cast %177 : vector<16xf32> to vector<16x1xf32>
    %cst_83 = arith.constant 3.200000e+01 : f32
    %179 = vector.broadcast %cst_83 : f32 to vector<16x1xf32>
    %180 = arith.divf %178, %179 : vector<16x1xf32>
    %181 = vector.broadcast %173 : vector<16x1xf32> to vector<16x32xf32>
    %182 = arith.subf %165, %181 : vector<16x32xf32>
    %cst_84 = arith.constant 9.99999974E-6 : f32
    %183 = vector.broadcast %cst_84 : f32 to vector<16x1xf32>
    %184 = arith.addf %180, %183 : vector<16x1xf32>
    %185 = math.rsqrt %184 : vector<16x1xf32>
    %186 = vector.broadcast %185 : vector<16x1xf32> to vector<16x32xf32>
    %187 = arith.mulf %182, %186 : vector<16x32xf32>
    %188 = vector.broadcast %167 : vector<1x32xf32> to vector<16x32xf32>
    %189 = arith.mulf %187, %188 : vector<16x32xf32>
    %190 = vector.broadcast %169 : vector<1x32xf32> to vector<16x32xf32>
    %191 = arith.addf %189, %190 : vector<16x32xf32>
    %192 = vector.shape_cast %191 : vector<16x32xf32> to vector<2x8x32xf32>
    %c0_85 = arith.constant 0 : index
    %c0_86 = arith.constant 0 : index
    %c0_87 = arith.constant 0 : index
    %193 = vector.load %arg20[%c0_85, %c0_86, %c0_87] : memref<2x8x32xf32, #tpu.memory_space<vmem>>, vector<2x8x32xf32>
    tpu.vector_store %arg20[%c0_85, %c0_86, %c0_87], %192 {strides = array<i32>} : memref<2x8x32xf32, #tpu.memory_space<vmem>>, vector<2x8x32xf32>,
    return
  }
  func.func @transform_0(%arg0: i32) -> (i32, i32, i32) {
    %c0_i32 = arith.constant 0 : i32
    %c0_i32_0 = arith.constant 0 : i32
    %c0_i32_1 = arith.constant 0 : i32
    %c0_i32_2 = arith.constant 0 : i32
    return %c0_i32, %c0_i32_0, %c0_i32_1 : i32, i32, i32
  }
  func.func @transform_1(%arg0: i32) -> (i32, i32) {
    %c0_i32 = arith.constant 0 : i32
    %c0_i32_0 = arith.constant 0 : i32
    %c0_i32_1 = arith.constant 0 : i32
    return %c0_i32, %c0_i32_0 : i32, i32
  }
  func.func @transform_2(%arg0: i32) -> (i32, i32) {
    %c0_i32 = arith.constant 0 : i32
    %c0_i32_0 = arith.constant 0 : i32
    %c0_i32_1 = arith.constant 0 : i32
    return %c0_i32, %c0_i32_0 : i32, i32
  }
  func.func @transform_3(%arg0: i32) -> (i32, i32, i32) {
    %c0_i32 = arith.constant 0 : i32
    %c0_i32_0 = arith.constant 0 : i32
    %c0_i32_1 = arith.constant 0 : i32
    return %arg0, %c0_i32, %c0_i32_0 : i32, i32, i32
  }
  func.func @transform_4(%arg0: i32) -> (i32, i32, i32) {
    %c0_i32 = arith.constant 0 : i32
    %c0_i32_0 = arith.constant 0 : i32
    %c0_i32_1 = arith.constant 0 : i32
    return %arg0, %c0_i32, %c0_i32_0 : i32, i32, i32
  }
  func.func @transform_5(%arg0: i32) -> (i32, i32, i32) {
    %c0_i32 = arith.constant 0 : i32
    %c0_i32_0 = arith.constant 0 : i32
    %c0_i32_1 = arith.constant 0 : i32
    return %arg0, %c0_i32, %c0_i32_0 : i32, i32, i32
  }
  func.func @transform_6(%arg0: i32) -> (i32, i32, i32) {
    %c0_i32 = arith.constant 0 : i32
    %c0_i32_0 = arith.constant 0 : i32
    %c0_i32_1 = arith.constant 0 : i32
    return %arg0, %c0_i32, %c0_i32_0 : i32, i32, i32
  }
  func.func @transform_7(%arg0: i32) -> (i32, i32, i32) {
    %c0_i32 = arith.constant 0 : i32
    %c0_i32_0 = arith.constant 0 : i32
    %c0_i32_1 = arith.constant 0 : i32
    return %arg0, %c0_i32, %c0_i32_0 : i32, i32, i32
  }
  func.func @transform_8(%arg0: i32) -> (i32, i32, i32) {
    %c0_i32 = arith.constant 0 : i32
    %c0_i32_0 = arith.constant 0 : i32
    %c0_i32_1 = arith.constant 0 : i32
    return %arg0, %c0_i32, %c0_i32_0 : i32, i32, i32
  }
  func.func @transform_9(%arg0: i32) -> (i32, i32, i32) {
    %c0_i32 = arith.constant 0 : i32
    %c0_i32_0 = arith.constant 0 : i32
    %c0_i32_1 = arith.constant 0 : i32
    return %arg0, %c0_i32, %c0_i32_0 : i32, i32, i32
  }
  func.func @transform_10(%arg0: i32) -> (i32, i32, i32) {
    %c0_i32 = arith.constant 0 : i32
    %c0_i32_0 = arith.constant 0 : i32
    %c0_i32_1 = arith.constant 0 : i32
    return %arg0, %c0_i32, %c0_i32_0 : i32, i32, i32
  }
  func.func @transform_11(%arg0: i32) -> (i32, i32, i32) {
    %c0_i32 = arith.constant 0 : i32
    %c0_i32_0 = arith.constant 0 : i32
    %c0_i32_1 = arith.constant 0 : i32
    return %arg0, %c0_i32, %c0_i32_0 : i32, i32, i32
  }
  func.func @transform_12(%arg0: i32) -> (i32, i32, i32) {
    %c0_i32 = arith.constant 0 : i32
    %c0_i32_0 = arith.constant 0 : i32
    %c0_i32_1 = arith.constant 0 : i32
    return %arg0, %c0_i32, %c0_i32_0 : i32, i32, i32
  }
  func.func @transform_13(%arg0: i32) -> (i32, i32, i32) {
    %c0_i32 = arith.constant 0 : i32
    %c0_i32_0 = arith.constant 0 : i32
    %c0_i32_1 = arith.constant 0 : i32
    return %arg0, %c0_i32, %c0_i32_0 : i32, i32, i32
  }
  func.func @transform_14(%arg0: i32) -> (i32, i32, i32) {
    %c0_i32 = arith.constant 0 : i32
    %c0_i32_0 = arith.constant 0 : i32
    %c0_i32_1 = arith.constant 0 : i32
    return %arg0, %c0_i32, %c0_i32_0 : i32, i32, i32
  }
  func.func @transform_15(%arg0: i32) -> (i32, i32, i32) {
    %c0_i32 = arith.constant 0 : i32
    %c0_i32_0 = arith.constant 0 : i32
    %c0_i32_1 = arith.constant 0 : i32
    return %arg0, %c0_i32, %c0_i32_0 : i32, i32, i32
  }
  func.func @transform_16(%arg0: i32) -> (i32, i32, i32) {
    %c0_i32 = arith.constant 0 : i32
    %c0_i32_0 = arith.constant 0 : i32
    %c0_i32_1 = arith.constant 0 : i32
    return %arg0, %c0_i32, %c0_i32_0 : i32, i32, i32
  }
  func.func @transform_17(%arg0: i32) -> (i32, i32, i32) {
    %c0_i32 = arith.constant 0 : i32
    %c0_i32_0 = arith.constant 0 : i32
    %c0_i32_1 = arith.constant 0 : i32
    return %arg0, %c0_i32, %c0_i32_0 : i32, i32, i32
  }
  func.func @transform_18(%arg0: i32) -> (i32, i32, i32) {
    %c0_i32 = arith.constant 0 : i32
    %c0_i32_0 = arith.constant 0 : i32
    %c0_i32_1 = arith.constant 0 : i32
    return %arg0, %c0_i32, %c0_i32_0 : i32, i32, i32
  }
  func.func @transform_19(%arg0: i32) -> (i32, i32, i32) {
    %c0_i32 = arith.constant 0 : i32
    %c0_i32_0 = arith.constant 0 : i32
    %c0_i32_1 = arith.constant 0 : i32
    %c0_i32_2 = arith.constant 0 : i32
    return %c0_i32, %c0_i32_0, %c0_i32_1 : i32, i32, i32
  }
}

</mosaic_0001>

<llo_original>
// kernel: tpu_custom_call.1
$region0: #{tpu_custom_call.1}
  #allocation0 [shape = 'u32[]', space=smem, size = 0x4, offset = 0x4, fixed_abs, tag = 'smem constant byte address 0x4 - core index']
  #allocation1 [shape = 'u32[144,128]{1,0:T(1,128)}', space=vmem, size = 0x12000, scoped, tag = 'internal scratch']
  %s0 = inlined_call_operand.hbm [shape: f32[2,8,32], index: 0, kind: input, shape index: {}]
  %s1 = inlined_call_operand.vmem [shape: f32[2,32], index: 1, kind: input, shape index: {}]
  %s2 = inlined_call_operand.hbm [shape: f32[8,8], index: 2, kind: input, shape index: {}]
  %s3 = inlined_call_operand.vmem [shape: bf16[2,32,32], index: 3, kind: input, shape index: {}]
  %s4 = inlined_call_operand.vmem [shape: bf16[2,32,32], index: 4, kind: input, shape index: {}]
  %s5 = inlined_call_operand.vmem [shape: bf16[2,32,32], index: 5, kind: input, shape index: {}]
  %s6 = inlined_call_operand.vmem [shape: f32[2,1,32], index: 6, kind: input, shape index: {}]
  %s7 = inlined_call_operand.vmem [shape: f32[2,1,32], index: 7, kind: input, shape index: {}]
  %s8 = inlined_call_operand.vmem [shape: f32[2,1,32], index: 8, kind: input, shape index: {}]
  %s9 = inlined_call_operand.hbm [shape: bf16[2,32,32], index: 9, kind: input, shape index: {}]
  %s10 = inlined_call_operand.vmem [shape: f32[2,1,32], index: 10, kind: input, shape index: {}]
  %s11 = inlined_call_operand.vmem [shape: f32[2,1,32], index: 11, kind: input, shape index: {}]
  %s12 = inlined_call_operand.vmem [shape: f32[2,1,32], index: 12, kind: input, shape index: {}]
  %s13 = inlined_call_operand.hbm [shape: bf16[2,32,64], index: 13, kind: input, shape index: {}]
  %s14 = inlined_call_operand.vmem [shape: f32[2,1,64], index: 14, kind: input, shape index: {}]
  %s15 = inlined_call_operand.vmem [shape: bf16[2,64,32], index: 15, kind: input, shape index: {}]
  %s16 = inlined_call_operand.vmem [shape: f32[2,1,32], index: 16, kind: input, shape index: {}]
  %s17 = inlined_call_operand.vmem [shape: f32[2,1,32], index: 17, kind: input, shape index: {}]
  %s18 = inlined_call_operand.vmem [shape: f32[2,1,32], index: 18, kind: input, shape index: {}]
  %s19 = inlined_call_operand.hbm [shape: f32[2,8,32], index: 19, kind: output, shape index: {}]
  %s20 = sld [smem:[#allocation0]]
  $region129: #{tpu_custom_call.1} parent=0
    _
  %s22 = ssub.s32 1, %s20
  %s23 = scalar_select 0, %s22, %s20
  $region1: #{tpu_custom_call.1} parent=0
    #allocation2 [shape = 'u8[8192]{0}', space=vmem, size = 0x2000, scoped, tag = 'input window, operand 0, single buffered']
    #allocation3 [shape = 's32[2]{0}', space=sflag, size = 0x8, scoped, tag = 'scoped memory for tpu_custom_call.1']
    #allocation4 [shape = 's32[2]{0}', space=sflag, size = 0x8, scoped, tag = 'scoped memory for tpu_custom_call.1']
    #allocation5 [shape = 'u8[4096]{0}', space=vmem, size = 0x1000, scoped, tag = 'input window, operand 2, single buffered']
    #allocation6 [shape = 's32[1]{0}', space=sflag, size = 0x4, scoped, tag = 'scoped memory for tpu_custom_call.1']
    #allocation7 [shape = 'u8[16384]{0}', space=vmem, size = 0x4000, scoped, tag = 'input window, operand 9']
    #allocation8 [shape = 'u8[16384]{0}', space=vmem, size = 0x4000, scoped, tag = 'input window, operand 13']
    #allocation9 [shape = 'u8[8192]{0}', space=vmem, size = 0x2000, scoped, tag = 'output window, operand 0, single buffered']
    %24 = vsyncpa [#allocation3], 0
    %25 = vsyncpa [#allocation6], 0
    %26 = vsyncpa [#allocation4], 0
    loop: start=0, step=1, limit=4
    $region2: #{tpu_custom_call.1} parent=1 // loop_pre_header
      _
    $region3: #{tpu_custom_call.1} parent=1 // loop_header
      %s28 = sphi 0, %s32
      %p29 = scmp.ge.s32.totalorder %s28, 4
      %s36 = sphi 0, %s36
      %s38 = sphi 0, %s36
      %s39 = sphi 0, %s38
      %s53 = sphi 0, %s39
      %s57 = sphi 0, %s57
      %s59 = sphi 0, %s57
      %s60 = sphi 0, %s59
      %s74 = sphi 0, %s60
      %s78 = sphi 0, %s78
      %s80 = sphi 0, %s78
      %s81 = sphi 0, %s80
      %s95 = sphi 0, %s81
      %s101 = sphi 0, %s103
      %s104 = sphi 0, %s101
      %s105 = sphi 0, %s104
      %s121 = sphi 0, %s105
      %s127 = sphi 0, %s129
      %s130 = sphi 0, %s127
      %s131 = sphi 0, %s130
      %s147 = sphi 0, %s131
      %s153 = sphi 0, %s155
      %s156 = sphi 0, %s153
      %s157 = sphi 0, %s156
      %s173 = sphi 0, %s157
      %s179 = sphi 0, %s181
      %s182 = sphi 0, %s179
      %s183 = sphi 0, %s182
      %s199 = sphi 0, %s183
      %s205 = sphi 0, %s207
      %s208 = sphi 0, %s205
      %s209 = sphi 0, %s208
      %s225 = sphi 0, %s209
      %s231 = sphi 0, %s233
      %s234 = sphi 0, %s231
      %s235 = sphi 0, %s234
      %s251 = sphi 0, %s235
      %s257 = sphi 0, %s259
      %s260 = sphi 0, %s257
      %s261 = sphi 0, %s260
      %s277 = sphi 0, %s261
      %s283 = sphi 0, %s285
      %s286 = sphi 0, %s283
      %s287 = sphi 0, %s286
      %s303 = sphi 0, %s287
      %s309 = sphi 0, %s311
      %s312 = sphi 0, %s309
      %s313 = sphi 0, %s312
      %s329 = sphi 0, %s313
      %s335 = sphi 0, %s337
      %s338 = sphi 0, %s335
      %s339 = sphi 0, %s338
      %s355 = sphi 0, %s339
      %s361 = sphi 0, %s363
      %s364 = sphi 0, %s361
      %s365 = sphi 0, %s364
      %s381 = sphi 0, %s365
      %s387 = sphi 0, %s389
      %s390 = sphi 0, %s387
      %s391 = sphi 0, %s390
      %s407 = sphi 0, %s391
      %s413 = sphi 0, %s415
      %s416 = sphi 0, %s413
      %s417 = sphi 0, %s416
      %s433 = sphi 0, %s417
      %s439 = sphi 0, %s441
      %s442 = sphi 0, %s439
      %s443 = sphi 0, %s442
      %s459 = sphi 0, %s443
      %s465 = sphi 0, %s467
      %s468 = sphi 0, %s465
      %s469 = sphi 0, %s468
      %s485 = sphi 0, %s469
      %s491 = sphi 0, %s493
      %s494 = sphi 0, %s491
      %s495 = sphi 0, %s494
      %s511 = sphi 0, %s495
      %s515 = sphi 0, %s515
      %s517 = sphi 0, %s515
      %s518 = sphi 0, %s517
      %s532 = sphi 0, %s518
    $region4: #{tpu_custom_call.1} parent=1 // loop_header_branch
      %31 = sbr.rel (%p29) target = $region8
    $region5: #{tpu_custom_call.1} parent=1 // loop_body
      %s33 = ssub.s32 %s28, 1
      %s34 = ssub.s32 %s28, 2
      %s35 = sadd.s32 %s28, 1
      %s37 = sadd.s32 %s36, 1
      %p40 = scmp.eq.s32.totalorder %s28, 1
      %p41 = scmp.ne.s32.totalorder %s36, %s38
      %p42 = scmp.eq.s32.totalorder %s28, 0
      %p43 = por %p41, %p42
      %p44 = scmp.ne.s32.totalorder %s36, %s38
      %p45 = scmp.eq.s32.totalorder %s33, 1
      %p46 = por %p44, %p45
      %p47 = scmp.ne.s32.totalorder %s38, %s39
      %p48 = scmp.eq.s32.totalorder %s33, 0
      %p49 = por %p47, %p48
      %p50 = scmp.ne.s32.totalorder %s38, %s39
      %p51 = scmp.eq.s32.totalorder %s34, 1
      %p52 = por %p50, %p51
      %p54 = scmp.ne.s32.totalorder %s39, %s53
      %p55 = scmp.eq.s32.totalorder %s34, 0
      %p56 = por %p54, %p55
      %s58 = sadd.s32 %s57, 1
      %p61 = scmp.eq.s32.totalorder %s28, 1
      %p62 = scmp.ne.s32.totalorder %s57, %s59
      %p63 = scmp.eq.s32.totalorder %s28, 0
      %p64 = por %p62, %p63
      %p65 = scmp.ne.s32.totalorder %s57, %s59
      %p66 = scmp.eq.s32.totalorder %s33, 1
      %p67 = por %p65, %p66
      %p68 = scmp.ne.s32.totalorder %s59, %s60
      %p69 = scmp.eq.s32.totalorder %s33, 0
      %p70 = por %p68, %p69
      %p71 = scmp.ne.s32.totalorder %s59, %s60
      %p72 = scmp.eq.s32.totalorder %s34, 1
      %p73 = por %p71, %p72
      %p75 = scmp.ne.s32.totalorder %s60, %s74
      %p76 = scmp.eq.s32.totalorder %s34, 0
      %p77 = por %p75, %p76
      %s79 = sadd.s32 %s78, 1
      %p82 = scmp.eq.s32.totalorder %s28, 1
      %p83 = scmp.ne.s32.totalorder %s78, %s80
      %p84 = scmp.eq.s32.totalorder %s28, 0
      %p85 = por %p83, %p84
      %p86 = scmp.ne.s32.totalorder %s78, %s80
      %p87 = scmp.eq.s32.totalorder %s33, 1
      %p88 = por %p86, %p87
      %p89 = scmp.ne.s32.totalorder %s80, %s81
      %p90 = scmp.eq.s32.totalorder %s33, 0
      %p91 = por %p89, %p90
      %p92 = scmp.ne.s32.totalorder %s80, %s81
      %p93 = scmp.eq.s32.totalorder %s34, 1
      %p94 = por %p92, %p93
      %p96 = scmp.ne.s32.totalorder %s81, %s95
      %p97 = scmp.eq.s32.totalorder %s34, 0
      %p98 = por %p96, %p97
      %s99 = ssub.s32 %s28, %s35
      %p100 = scmp.eq.s32.totalorder %s99, 0
      %s102 = sadd.s32 %s101, 1
      %s103 = scalar_select %p100, %s101, %s102
      %p106 = pneg %p100
      %p107 = scmp.eq.s32.totalorder %s28, 1
      %p108 = por %p106, %p107
      %p109 = scmp.ne.s32.totalorder %s101, %s104
      %p110 = scmp.eq.s32.totalorder %s28, 0
      %p111 = por %p109, %p110
      %p112 = scmp.ne.s32.totalorder %s101, %s104
      %p113 = scmp.eq.s32.totalorder %s33, 1
      %p114 = por %p112, %p113
      %p115 = scmp.ne.s32.totalorder %s104, %s105
      %p116 = scmp.eq.s32.totalorder %s33, 0
      %p117 = por %p115, %p116
      %p118 = scmp.ne.s32.totalorder %s104, %s105
      %p119 = scmp.eq.s32.totalorder %s34, 1
      %p120 = por %p118, %p119
      %p122 = scmp.ne.s32.totalorder %s105, %s121
      %p123 = scmp.eq.s32.totalorder %s34, 0
      %p124 = por %p122, %p123
      %s125 = ssub.s32 %s28, %s35
      %p126 = scmp.eq.s32.totalorder %s125, 0
      %s128 = sadd.s32 %s127, 1
      %s129 = scalar_select %p126, %s127, %s128
      %p132 = pneg %p126
      %p133 = scmp.eq.s32.totalorder %s28, 1
      %p134 = por %p132, %p133
      %p135 = scmp.ne.s32.totalorder %s127, %s130
      %p136 = scmp.eq.s32.totalorder %s28, 0
      %p137 = por %p135, %p136
      %p138 = scmp.ne.s32.totalorder %s127, %s130
      %p139 = scmp.eq.s32.totalorder %s33, 1
      %p140 = por %p138, %p139
      %p141 = scmp.ne.s32.totalorder %s130, %s131
      %p142 = scmp.eq.s32.totalorder %s33, 0
      %p143 = por %p141, %p142
      %p144 = scmp.ne.s32.totalorder %s130, %s131
      %p145 = scmp.eq.s32.totalorder %s34, 1
      %p146 = por %p144, %p145
      %p148 = scmp.ne.s32.totalorder %s131, %s147
      %p149 = scmp.eq.s32.totalorder %s34, 0
      %p150 = por %p148, %p149
      %s151 = ssub.s32 %s28, %s35
      %p152 = scmp.eq.s32.totalorder %s151, 0
      %s154 = sadd.s32 %s153, 1
      %s155 = scalar_select %p152, %s153, %s154
      %p158 = pneg %p152
      %p159 = scmp.eq.s32.totalorder %s28, 1
      %p160 = por %p158, %p159
      %p161 = scmp.ne.s32.totalorder %s153, %s156
      %p162 = scmp.eq.s32.totalorder %s28, 0
      %p163 = por %p161, %p162
      %p164 = scmp.ne.s32.totalorder %s153, %s156
      %p165 = scmp.eq.s32.totalorder %s33, 1
      %p166 = por %p164, %p165
      %p167 = scmp.ne.s32.totalorder %s156, %s157
      %p168 = scmp.eq.s32.totalorder %s33, 0
      %p169 = por %p167, %p168
      %p170 = scmp.ne.s32.totalorder %s156, %s157
      %p171 = scmp.eq.s32.totalorder %s34, 1
      %p172 = por %p170, %p171
      %p174 = scmp.ne.s32.totalorder %s157, %s173
      %p175 = scmp.eq.s32.totalorder %s34, 0
      %p176 = por %p174, %p175
      %s177 = ssub.s32 %s28, %s35
      %p178 = scmp.eq.s32.totalorder %s177, 0
      %s180 = sadd.s32 %s179, 1
      %s181 = scalar_select %p178, %s179, %s180
      %p184 = pneg %p178
      %p185 = scmp.eq.s32.totalorder %s28, 1
      %p186 = por %p184, %p185
      %p187 = scmp.ne.s32.totalorder %s179, %s182
      %p188 = scmp.eq.s32.totalorder %s28, 0
      %p189 = por %p187, %p188
      %p190 = scmp.ne.s32.totalorder %s179, %s182
      %p191 = scmp.eq.s32.totalorder %s33, 1
      %p192 = por %p190, %p191
      %p193 = scmp.ne.s32.totalorder %s182, %s183
      %p194 = scmp.eq.s32.totalorder %s33, 0
      %p195 = por %p193, %p194
      %p196 = scmp.ne.s32.totalorder %s182, %s183
      %p197 = scmp.eq.s32.totalorder %s34, 1
      %p198 = por %p196, %p197
      %p200 = scmp.ne.s32.totalorder %s183, %s199
      %p201 = scmp.eq.s32.totalorder %s34, 0
      %p202 = por %p200, %p201
      %s203 = ssub.s32 %s28, %s35
      %p204 = scmp.eq.s32.totalorder %s203, 0
      %s206 = sadd.s32 %s205, 1
      %s207 = scalar_select %p204, %s205, %s206
      %p210 = pneg %p204
      %p211 = scmp.eq.s32.totalorder %s28, 1
      %p212 = por %p210, %p211
      %p213 = scmp.ne.s32.totalorder %s205, %s208
      %p214 = scmp.eq.s32.totalorder %s28, 0
      %p215 = por %p213, %p214
      %p216 = scmp.ne.s32.totalorder %s205, %s208
      %p217 = scmp.eq.s32.totalorder %s33, 1
      %p218 = por %p216, %p217
      %p219 = scmp.ne.s32.totalorder %s208, %s209
      %p220 = scmp.eq.s32.totalorder %s33, 0
      %p221 = por %p219, %p220
      %p222 = scmp.ne.s32.totalorder %s208, %s209
      %p223 = scmp.eq.s32.totalorder %s34, 1
      %p224 = por %p222, %p223
      %p226 = scmp.ne.s32.totalorder %s209, %s225
      %p227 = scmp.eq.s32.totalorder %s34, 0
      %p228 = por %p226, %p227
      %s229 = ssub.s32 %s28, %s35
      %p230 = scmp.eq.s32.totalorder %s229, 0
      %s232 = sadd.s32 %s231, 1
      %s233 = scalar_select %p230, %s231, %s232
      %p236 = pneg %p230
      %p237 = scmp.eq.s32.totalorder %s28, 1
      %p238 = por %p236, %p237
      %p239 = scmp.ne.s32.totalorder %s231, %s234
      %p240 = scmp.eq.s32.totalorder %s28, 0
      %p241 = por %p239, %p240
      %p242 = scmp.ne.s32.totalorder %s231, %s234
      %p243 = scmp.eq.s32.totalorder %s33, 1
      %p244 = por %p242, %p243
      %p245 = scmp.ne.s32.totalorder %s234, %s235
      %p246 = scmp.eq.s32.totalorder %s33, 0
      %p247 = por %p245, %p246
      %p248 = scmp.ne.s32.totalorder %s234, %s235
      %p249 = scmp.eq.s32.totalorder %s34, 1
      %p250 = por %p248, %p249
      %p252 = scmp.ne.s32.totalorder %s235, %s251
      %p253 = scmp.eq.s32.totalorder %s34, 0
      %p254 = por %p252, %p253
      %s255 = ssub.s32 %s28, %s35
      %p256 = scmp.eq.s32.totalorder %s255, 0
      %s258 = sadd.s32 %s257, 1
      %s259 = scalar_select %p256, %s257, %s258
      %p262 = pneg %p256
      %p263 = scmp.eq.s32.totalorder %s28, 1
      %p264 = por %p262, %p263
      %p265 = scmp.ne.s32.totalorder %s257, %s260
      %p266 = scmp.eq.s32.totalorder %s28, 0
      %p267 = por %p265, %p266
      %p268 = scmp.ne.s32.totalorder %s257, %s260
      %p269 = scmp.eq.s32.totalorder %s33, 1
      %p270 = por %p268, %p269
      %p271 = scmp.ne.s32.totalorder %s260, %s261
      %p272 = scmp.eq.s32.totalorder %s33, 0
      %p273 = por %p271, %p272
      %p274 = scmp.ne.s32.totalorder %s260, %s261
      %p275 = scmp.eq.s32.totalorder %s34, 1
      %p276 = por %p274, %p275
      %p278 = scmp.ne.s32.totalorder %s261, %s277
      %p279 = scmp.eq.s32.totalorder %s34, 0
      %p280 = por %p278, %p279
      %s281 = ssub.s32 %s28, %s35
      %p282 = scmp.eq.s32.totalorder %s281, 0
      %s284 = sadd.s32 %s283, 1
      %s285 = scalar_select %p282, %s283, %s284
      %p288 = pneg %p282
      %p289 = scmp.eq.s32.totalorder %s28, 1
      %p290 = por %p288, %p289
      %p291 = scmp.ne.s32.totalorder %s283, %s286
      %p292 = scmp.eq.s32.totalorder %s28, 0
      %p293 = por %p291, %p292
      %p294 = scmp.ne.s32.totalorder %s283, %s286
      %p295 = scmp.eq.s32.totalorder %s33, 1
      %p296 = por %p294, %p295
      %p297 = scmp.ne.s32.totalorder %s286, %s287
      %p298 = scmp.eq.s32.totalorder %s33, 0
      %p299 = por %p297, %p298
      %p300 = scmp.ne.s32.totalorder %s286, %s287
      %p301 = scmp.eq.s32.totalorder %s34, 1
      %p302 = por %p300, %p301
      %p304 = scmp.ne.s32.totalorder %s287, %s303
      %p305 = scmp.eq.s32.totalorder %s34, 0
      %p306 = por %p304, %p305
      %s307 = ssub.s32 %s28, %s35
      %p308 = scmp.eq.s32.totalorder %s307, 0
      %s310 = sadd.s32 %s309, 1
      %s311 = scalar_select %p308, %s309, %s310
      %p314 = pneg %p308
      %p315 = scmp.eq.s32.totalorder %s28, 1
      %p316 = por %p314, %p315
      %p317 = scmp.ne.s32.totalorder %s309, %s312
      %p318 = scmp.eq.s32.totalorder %s28, 0
      %p319 = por %p317, %p318
      %p320 = scmp.ne.s32.totalorder %s309, %s312
      %p321 = scmp.eq.s32.totalorder %s33, 1
      %p322 = por %p320, %p321
      %p323 = scmp.ne.s32.totalorder %s312, %s313
      %p324 = scmp.eq.s32.totalorder %s33, 0
      %p325 = por %p323, %p324
      %p326 = scmp.ne.s32.totalorder %s312, %s313
      %p327 = scmp.eq.s32.totalorder %s34, 1
      %p328 = por %p326, %p327
      %p330 = scmp.ne.s32.totalorder %s313, %s329
      %p331 = scmp.eq.s32.totalorder %s34, 0
      %p332 = por %p330, %p331
      %s333 = ssub.s32 %s28, %s35
      %p334 = scmp.eq.s32.totalorder %s333, 0
      %s336 = sadd.s32 %s335, 1
      %s337 = scalar_select %p334, %s335, %s336
      %p340 = pneg %p334
      %p341 = scmp.eq.s32.totalorder %s28, 1
      %p342 = por %p340, %p341
      %p343 = scmp.ne.s32.totalorder %s335, %s338
      %p344 = scmp.eq.s32.totalorder %s28, 0
      %p345 = por %p343, %p344
      %p346 = scmp.ne.s32.totalorder %s335, %s338
      %p347 = scmp.eq.s32.totalorder %s33, 1
      %p348 = por %p346, %p347
      %p349 = scmp.ne.s32.totalorder %s338, %s339
      %p350 = scmp.eq.s32.totalorder %s33, 0
      %p351 = por %p349, %p350
      %p352 = scmp.ne.s32.totalorder %s338, %s339
      %p353 = scmp.eq.s32.totalorder %s34, 1
      %p354 = por %p352, %p353
      %p356 = scmp.ne.s32.totalorder %s339, %s355
      %p357 = scmp.eq.s32.totalorder %s34, 0
      %p358 = por %p356, %p357
      %s359 = ssub.s32 %s28, %s35
      %p360 = scmp.eq.s32.totalorder %s359, 0
      %s362 = sadd.s32 %s361, 1
      %s363 = scalar_select %p360, %s361, %s362
      %p366 = pneg %p360
      %p367 = scmp.eq.s32.totalorder %s28, 1
      %p368 = por %p366, %p367
      %p369 = scmp.ne.s32.totalorder %s361, %s364
      %p370 = scmp.eq.s32.totalorder %s28, 0
      %p371 = por %p369, %p370
      %p372 = scmp.ne.s32.totalorder %s361, %s364
      %p373 = scmp.eq.s32.totalorder %s33, 1
      %p374 = por %p372, %p373
      %p375 = scmp.ne.s32.totalorder %s364, %s365
      %p376 = scmp.eq.s32.totalorder %s33, 0
      %p377 = por %p375, %p376
      %p378 = scmp.ne.s32.totalorder %s364, %s365
      %p379 = scmp.eq.s32.totalorder %s34, 1
      %p380 = por %p378, %p379
      %p382 = scmp.ne.s32.totalorder %s365, %s381
      %p383 = scmp.eq.s32.totalorder %s34, 0
      %p384 = por %p382, %p383
      %s385 = ssub.s32 %s28, %s35
      %p386 = scmp.eq.s32.totalorder %s385, 0
      %s388 = sadd.s32 %s387, 1
      %s389 = scalar_select %p386, %s387, %s388
      %p392 = pneg %p386
      %p393 = scmp.eq.s32.totalorder %s28, 1
      %p394 = por %p392, %p393
      %p395 = scmp.ne.s32.totalorder %s387, %s390
      %p396 = scmp.eq.s32.totalorder %s28, 0
      %p397 = por %p395, %p396
      %p398 = scmp.ne.s32.totalorder %s387, %s390
      %p399 = scmp.eq.s32.totalorder %s33, 1
      %p400 = por %p398, %p399
      %p401 = scmp.ne.s32.totalorder %s390, %s391
      %p402 = scmp.eq.s32.totalorder %s33, 0
      %p403 = por %p401, %p402
      %p404 = scmp.ne.s32.totalorder %s390, %s391
      %p405 = scmp.eq.s32.totalorder %s34, 1
      %p406 = por %p404, %p405
      %p408 = scmp.ne.s32.totalorder %s391, %s407
      %p409 = scmp.eq.s32.totalorder %s34, 0
      %p410 = por %p408, %p409
      %s411 = ssub.s32 %s28, %s35
      %p412 = scmp.eq.s32.totalorder %s411, 0
      %s414 = sadd.s32 %s413, 1
      %s415 = scalar_select %p412, %s413, %s414
      %p418 = pneg %p412
      %p419 = scmp.eq.s32.totalorder %s28, 1
      %p420 = por %p418, %p419
      %p421 = scmp.ne.s32.totalorder %s413, %s416
      %p422 = scmp.eq.s32.totalorder %s28, 0
      %p423 = por %p421, %p422
      %p424 = scmp.ne.s32.totalorder %s413, %s416
      %p425 = scmp.eq.s32.totalorder %s33, 1
      %p426 = por %p424, %p425
      %p427 = scmp.ne.s32.totalorder %s416, %s417
      %p428 = scmp.eq.s32.totalorder %s33, 0
      %p429 = por %p427, %p428
      %p430 = scmp.ne.s32.totalorder %s416, %s417
      %p431 = scmp.eq.s32.totalorder %s34, 1
      %p432 = por %p430, %p431
      %p434 = scmp.ne.s32.totalorder %s417, %s433
      %p435 = scmp.eq.s32.totalorder %s34, 0
      %p436 = por %p434, %p435
      %s437 = ssub.s32 %s28, %s35
      %p438 = scmp.eq.s32.totalorder %s437, 0
      %s440 = sadd.s32 %s439, 1
      %s441 = scalar_select %p438, %s439, %s440
      %p444 = pneg %p438
      %p445 = scmp.eq.s32.totalorder %s28, 1
      %p446 = por %p444, %p445
      %p447 = scmp.ne.s32.totalorder %s439, %s442
      %p448 = scmp.eq.s32.totalorder %s28, 0
      %p449 = por %p447, %p448
      %p450 = scmp.ne.s32.totalorder %s439, %s442
      %p451 = scmp.eq.s32.totalorder %s33, 1
      %p452 = por %p450, %p451
      %p453 = scmp.ne.s32.totalorder %s442, %s443
      %p454 = scmp.eq.s32.totalorder %s33, 0
      %p455 = por %p453, %p454
      %p456 = scmp.ne.s32.totalorder %s442, %s443
      %p457 = scmp.eq.s32.totalorder %s34, 1
      %p458 = por %p456, %p457
      %p460 = scmp.ne.s32.totalorder %s443, %s459
      %p461 = scmp.eq.s32.totalorder %s34, 0
      %p462 = por %p460, %p461
      %s463 = ssub.s32 %s28, %s35
      %p464 = scmp.eq.s32.totalorder %s463, 0
      %s466 = sadd.s32 %s465, 1
      %s467 = scalar_select %p464, %s465, %s466
      %p470 = pneg %p464
      %p471 = scmp.eq.s32.totalorder %s28, 1
      %p472 = por %p470, %p471
      %p473 = scmp.ne.s32.totalorder %s465, %s468
      %p474 = scmp.eq.s32.totalorder %s28, 0
      %p475 = por %p473, %p474
      %p476 = scmp.ne.s32.totalorder %s465, %s468
      %p477 = scmp.eq.s32.totalorder %s33, 1
      %p478 = por %p476, %p477
      %p479 = scmp.ne.s32.totalorder %s468, %s469
      %p480 = scmp.eq.s32.totalorder %s33, 0
      %p481 = por %p479, %p480
      %p482 = scmp.ne.s32.totalorder %s468, %s469
      %p483 = scmp.eq.s32.totalorder %s34, 1
      %p484 = por %p482, %p483
      %p486 = scmp.ne.s32.totalorder %s469, %s485
      %p487 = scmp.eq.s32.totalorder %s34, 0
      %p488 = por %p486, %p487
      %s489 = ssub.s32 %s28, %s35
      %p490 = scmp.eq.s32.totalorder %s489, 0
      %s492 = sadd.s32 %s491, 1
      %s493 = scalar_select %p490, %s491, %s492
      %p496 = pneg %p490
      %p497 = scmp.eq.s32.totalorder %s28, 1
      %p498 = por %p496, %p497
      %p499 = scmp.ne.s32.totalorder %s491, %s494
      %p500 = scmp.eq.s32.totalorder %s28, 0
      %p501 = por %p499, %p500
      %p502 = scmp.ne.s32.totalorder %s491, %s494
      %p503 = scmp.eq.s32.totalorder %s33, 1
      %p504 = por %p502, %p503
      %p505 = scmp.ne.s32.totalorder %s494, %s495
      %p506 = scmp.eq.s32.totalorder %s33, 0
      %p507 = por %p505, %p506
      %p508 = scmp.ne.s32.totalorder %s494, %s495
      %p509 = scmp.eq.s32.totalorder %s34, 1
      %p510 = por %p508, %p509
      %p512 = scmp.ne.s32.totalorder %s495, %s511
      %p513 = scmp.eq.s32.totalorder %s34, 0
      %p514 = por %p512, %p513
      %s516 = sadd.s32 %s515, 1
      %p519 = scmp.eq.s32.totalorder %s28, 1
      %p520 = scmp.ne.s32.totalorder %s515, %s517
      %p521 = scmp.eq.s32.totalorder %s28, 0
      %p522 = por %p520, %p521
      %p523 = scmp.ne.s32.totalorder %s515, %s517
      %p524 = scmp.eq.s32.totalorder %s33, 1
      %p525 = por %p523, %p524
      %p526 = scmp.ne.s32.totalorder %s517, %s518
      %p527 = scmp.eq.s32.totalorder %s33, 0
      %p528 = por %p526, %p527
      %p529 = scmp.ne.s32.totalorder %s517, %s518
      %p530 = scmp.eq.s32.totalorder %s34, 1
      %p531 = por %p529, %p530
      %p533 = scmp.ne.s32.totalorder %s518, %s532
      %p534 = scmp.eq.s32.totalorder %s34, 0
      %p535 = por %p533, %p534
      %p536 = scmp.le.s32.totalorder 1, %s28
      %p537 = scmp.lt.s32.totalorder %s28, 3
      %p538 = pnand %p536, %p537
      %p539 = pneg %p538
      // Predicated region
      $region9: #{tpu_custom_call.1} parent=5 // pred_check
        _
      $region10: #{tpu_custom_call.1} parent=5 // pred_check_branch
        %541 = sbr.rel (%p538) target = $region12
      $region11: #{tpu_custom_call.1} parent=5 // pred_region
        %s542 = ssub.s32 %s28, 1
        // Predicated region
        $region13: #{tpu_custom_call.1} parent=11 // pred_check
          %p543 = pneg %p49
        $region14: #{tpu_custom_call.1} parent=11 // pred_check_branch
          %545 = sbr.rel (%p543) target = $region16
        $region15: #{tpu_custom_call.1} parent=11 // pred_region
          %s547 = ssub.s32 256, 256
          %548 = vsyncadd [#allocation3], %s547
          %s549 = sshll.u32 [#allocation2], 4
          %s550 = int_to_ptr.vmem [resolvable:$true] %s549
          %555 = dma.hbm_to_vmem [thread:$0]  %s0, 256, %s550, [#allocation3], 128, 128, 8
        $region16: #{tpu_custom_call.1} parent=11 // pred_fallthru
          _
        // Predicated region
        $region17: #{tpu_custom_call.1} parent=11 // pred_check
          %p556 = pneg %p70
        $region18: #{tpu_custom_call.1} parent=11 // pred_check_branch
          %558 = sbr.rel (%p556) target = $region20
        $region19: #{tpu_custom_call.1} parent=11 // pred_region
          _
        $region20: #{tpu_custom_call.1} parent=11 // pred_fallthru
          _
        // Predicated region
        $region21: #{tpu_custom_call.1} parent=11 // pred_check
          %p559 = pneg %p91
        $region22: #{tpu_custom_call.1} parent=11 // pred_check_branch
          %561 = sbr.rel (%p559) target = $region24
        $region23: #{tpu_custom_call.1} parent=11 // pred_region
          %s563 = ssub.s32 128, 128
          %564 = vsyncadd [#allocation6], %s563
          %s566 = sshll.u32 [#allocation5], 4
          %s567 = int_to_ptr.vmem [resolvable:$true] %s566
          %569 = dma.hbm_to_vmem [thread:$0]  %s2, 128, %s567, [#allocation6]
        $region24: #{tpu_custom_call.1} parent=11 // pred_fallthru
          _
      $region12: #{tpu_custom_call.1} parent=5 // pred_fallthru
        _
      %p570 = scmp.lt.s32.totalorder %s28, 2
      // Predicated region
      $region25: #{tpu_custom_call.1} parent=5 // pred_check
        %p571 = pneg %p570
      $region26: #{tpu_custom_call.1} parent=5 // pred_check_branch
        %573 = sbr.rel (%p571) target = $region28
      $region27: #{tpu_custom_call.1} parent=5 // pred_region
        // Predicated region
        $region29: #{tpu_custom_call.1} parent=27 // pred_check
          %p574 = pneg %p111
        $region30: #{tpu_custom_call.1} parent=27 // pred_check_branch
          %576 = sbr.rel (%p574) target = $region32
        $region31: #{tpu_custom_call.1} parent=27 // pred_region
          %p577 = scmp.lt.s32.totalorder %s28, 1
          %s578 = scalar_select %p577, %s28, 1
          %s579 = smul.addr %s578, 4
          %s580 = smul.addr %s579, 4
          %s581 = scalar_lea.vmem %s3, %s580
        $region32: #{tpu_custom_call.1} parent=27 // pred_fallthru
          _
        // Predicated region
        $region33: #{tpu_custom_call.1} parent=27 // pred_check
          %p582 = pneg %p137
        $region34: #{tpu_custom_call.1} parent=27 // pred_check_branch
          %584 = sbr.rel (%p582) target = $region36
        $region35: #{tpu_custom_call.1} parent=27 // pred_region
          %p585 = scmp.lt.s32.totalorder %s28, 1
          %s586 = scalar_select %p585, %s28, 1
          %s587 = smul.addr %s586, 4
          %s588 = smul.addr %s587, 4
          %s589 = scalar_lea.vmem %s4, %s588
        $region36: #{tpu_custom_call.1} parent=27 // pred_fallthru
          _
        // Predicated region
        $region37: #{tpu_custom_call.1} parent=27 // pred_check
          %p590 = pneg %p163
        $region38: #{tpu_custom_call.1} parent=27 // pred_check_branch
          %592 = sbr.rel (%p590) target = $region40
        $region39: #{tpu_custom_call.1} parent=27 // pred_region
          %p593 = scmp.lt.s32.totalorder %s28, 1
          %s594 = scalar_select %p593, %s28, 1
          %s595 = smul.addr %s594, 4
          %s596 = smul.addr %s595, 4
          %s597 = scalar_lea.vmem %s5, %s596
        $region40: #{tpu_custom_call.1} parent=27 // pred_fallthru
          _
        // Predicated region
        $region41: #{tpu_custom_call.1} parent=27 // pred_check
          %p598 = pneg %p189
        $region42: #{tpu_custom_call.1} parent=27 // pred_check_branch
          %600 = sbr.rel (%p598) target = $region44
        $region43: #{tpu_custom_call.1} parent=27 // pred_region
          %p601 = scmp.lt.s32.totalorder %s28, 1
          %s602 = scalar_select %p601, %s28, 1
          %s603 = scalar_lea.vmem %s6, %s602
        $region44: #{tpu_custom_call.1} parent=27 // pred_fallthru
          _
        // Predicated region
        $region45: #{tpu_custom_call.1} parent=27 // pred_check
          %p604 = pneg %p215
        $region46: #{tpu_custom_call.1} parent=27 // pred_check_branch
          %606 = sbr.rel (%p604) target = $region48
        $region47: #{tpu_custom_call.1} parent=27 // pred_region
          %p607 = scmp.lt.s32.totalorder %s28, 1
          %s608 = scalar_select %p607, %s28, 1
          %s609 = scalar_lea.vmem %s7, %s608
        $region48: #{tpu_custom_call.1} parent=27 // pred_fallthru
          _
        // Predicated region
        $region49: #{tpu_custom_call.1} parent=27 // pred_check
          %p610 = pneg %p241
        $region50: #{tpu_custom_call.1} parent=27 // pred_check_branch
          %612 = sbr.rel (%p610) target = $region52
        $region51: #{tpu_custom_call.1} parent=27 // pred_region
          %p613 = scmp.lt.s32.totalorder %s28, 1
          %s614 = scalar_select %p613, %s28, 1
          %s615 = scalar_lea.vmem %s8, %s614
        $region52: #{tpu_custom_call.1} parent=27 // pred_fallthru
          _
        // Predicated region
        $region53: #{tpu_custom_call.1} parent=27 // pred_check
          %p616 = pneg %p267
        $region54: #{tpu_custom_call.1} parent=27 // pred_check_branch
          %618 = sbr.rel (%p616) target = $region56
        $region55: #{tpu_custom_call.1} parent=27 // pred_region
          %s619 = sand.u32 %s28, 1
          %s620 = scalar_lea.sflag [#allocation3], %s619
          %s621 = sand.u32 %s257, 1
          %s622 = smul.addr %s621, 16
          %s623 = scalar_lea.vmem [#allocation7], %s622
          %s625 = ssub.s32 256, 256
          %626 = vsyncadd %s620, %s625
          %s627 = smul.addr %s28, 4
          %s628 = smul.addr %s627, 64
          %s629 = scalar_lea.hbm %s9, %s628
          %s630 = sshll.u32 %s623, 4
          %s631 = int_to_ptr.vmem [resolvable:$true] %s630
          %636 = dma.hbm_to_vmem [thread:$0]  %s629, 256, %s631, %s620, 64, 64, 4
        $region56: #{tpu_custom_call.1} parent=27 // pred_fallthru
          _
        // Predicated region
        $region57: #{tpu_custom_call.1} parent=27 // pred_check
          %p637 = pneg %p293
        $region58: #{tpu_custom_call.1} parent=27 // pred_check_branch
          %639 = sbr.rel (%p637) target = $region60
        $region59: #{tpu_custom_call.1} parent=27 // pred_region
          %p640 = scmp.lt.s32.totalorder %s28, 1
          %s641 = scalar_select %p640, %s28, 1
          %s642 = scalar_lea.vmem %s10, %s641
        $region60: #{tpu_custom_call.1} parent=27 // pred_fallthru
          _
        // Predicated region
        $region61: #{tpu_custom_call.1} parent=27 // pred_check
          %p643 = pneg %p319
        $region62: #{tpu_custom_call.1} parent=27 // pred_check_branch
          %645 = sbr.rel (%p643) target = $region64
        $region63: #{tpu_custom_call.1} parent=27 // pred_region
          %p646 = scmp.lt.s32.totalorder %s28, 1
          %s647 = scalar_select %p646, %s28, 1
          %s648 = scalar_lea.vmem %s11, %s647
        $region64: #{tpu_custom_call.1} parent=27 // pred_fallthru
          _
        // Predicated region
        $region65: #{tpu_custom_call.1} parent=27 // pred_check
          %p649 = pneg %p345
        $region66: #{tpu_custom_call.1} parent=27 // pred_check_branch
          %651 = sbr.rel (%p649) target = $region68
        $region67: #{tpu_custom_call.1} parent=27 // pred_region
          %p652 = scmp.lt.s32.totalorder %s28, 1
          %s653 = scalar_select %p652, %s28, 1
          %s654 = scalar_lea.vmem %s12, %s653
        $region68: #{tpu_custom_call.1} parent=27 // pred_fallthru
          _
        // Predicated region
        $region69: #{tpu_custom_call.1} parent=27 // pred_check
          %p655 = pneg %p371
        $region70: #{tpu_custom_call.1} parent=27 // pred_check_branch
          %657 = sbr.rel (%p655) target = $region72
        $region71: #{tpu_custom_call.1} parent=27 // pred_region
          %s658 = sand.u32 %s28, 1
          %s659 = scalar_lea.sflag [#allocation3], %s658
          %s660 = sand.u32 %s361, 1
          %s661 = smul.addr %s660, 16
          %s662 = scalar_lea.vmem [#allocation8], %s661
          %s664 = ssub.s32 256, 256
          %665 = vsyncadd %s659, %s664
          %s666 = smul.addr %s28, 4
          %s667 = smul.addr %s666, 64
          %s668 = scalar_lea.hbm %s13, %s667
          %s669 = sshll.u32 %s662, 4
          %s670 = int_to_ptr.vmem [resolvable:$true] %s669
          %675 = dma.hbm_to_vmem [thread:$0]  %s668, 256, %s670, %s659, 64, 64, 4
        $region72: #{tpu_custom_call.1} parent=27 // pred_fallthru
          _
        // Predicated region
        $region73: #{tpu_custom_call.1} parent=27 // pred_check
          %p676 = pneg %p397
        $region74: #{tpu_custom_call.1} parent=27 // pred_check_branch
          %678 = sbr.rel (%p676) target = $region76
        $region75: #{tpu_custom_call.1} parent=27 // pred_region
          %p679 = scmp.lt.s32.totalorder %s28, 1
          %s680 = scalar_select %p679, %s28, 1
          %s681 = scalar_lea.vmem %s14, %s680
        $region76: #{tpu_custom_call.1} parent=27 // pred_fallthru
          _
        // Predicated region
        $region77: #{tpu_custom_call.1} parent=27 // pred_check
          %p682 = pneg %p423
        $region78: #{tpu_custom_call.1} parent=27 // pred_check_branch
          %684 = sbr.rel (%p682) target = $region80
        $region79: #{tpu_custom_call.1} parent=27 // pred_region
          %p685 = scmp.lt.s32.totalorder %s28, 1
          %s686 = scalar_select %p685, %s28, 1
          %s687 = smul.addr %s686, 8
          %s688 = smul.addr %s687, 4
          %s689 = scalar_lea.vmem %s15, %s688
        $region80: #{tpu_custom_call.1} parent=27 // pred_fallthru
          _
        // Predicated region
        $region81: #{tpu_custom_call.1} parent=27 // pred_check
          %p690 = pneg %p449
        $region82: #{tpu_custom_call.1} parent=27 // pred_check_branch
          %692 = sbr.rel (%p690) target = $region84
        $region83: #{tpu_custom_call.1} parent=27 // pred_region
          %p693 = scmp.lt.s32.totalorder %s28, 1
          %s694 = scalar_select %p693, %s28, 1
          %s695 = scalar_lea.vmem %s16, %s694
        $region84: #{tpu_custom_call.1} parent=27 // pred_fallthru
          _
        // Predicated region
        $region85: #{tpu_custom_call.1} parent=27 // pred_check
          %p696 = pneg %p475
        $region86: #{tpu_custom_call.1} parent=27 // pred_check_branch
          %698 = sbr.rel (%p696) target = $region88
        $region87: #{tpu_custom_call.1} parent=27 // pred_region
          %p699 = scmp.lt.s32.totalorder %s28, 1
          %s700 = scalar_select %p699, %s28, 1
          %s701 = scalar_lea.vmem %s17, %s700
        $region88: #{tpu_custom_call.1} parent=27 // pred_fallthru
          _
        // Predicated region
        $region89: #{tpu_custom_call.1} parent=27 // pred_check
          %p702 = pneg %p501
        $region90: #{tpu_custom_call.1} parent=27 // pred_check_branch
          %704 = sbr.rel (%p702) target = $region92
        $region91: #{tpu_custom_call.1} parent=27 // pred_region
          %p705 = scmp.lt.s32.totalorder %s28, 1
          %s706 = scalar_select %p705, %s28, 1
          %s707 = scalar_lea.vmem %s18, %s706
        $region92: #{tpu_custom_call.1} parent=27 // pred_fallthru
          _
      $region28: #{tpu_custom_call.1} parent=5 // pred_fallthru
        _
      %p708 = scmp.le.s32.totalorder 1, %s28
      %p709 = scmp.lt.s32.totalorder %s28, 3
      %p710 = pnand %p708, %p709
      %p711 = pneg %p710
      // Predicated region
      $region93: #{tpu_custom_call.1} parent=5 // pred_check
        _
      $region94: #{tpu_custom_call.1} parent=5 // pred_check_branch
        %713 = sbr.rel (%p710) target = $region96
      $region95: #{tpu_custom_call.1} parent=5 // pred_region
        %s714 = ssub.s32 %s28, 1
        // Predicated region
        $region97: #{tpu_custom_call.1} parent=95 // pred_check
          %p715 = pneg %p49
        $region98: #{tpu_custom_call.1} parent=95 // pred_check_branch
          %717 = sbr.rel (%p715) target = $region100
        $region99: #{tpu_custom_call.1} parent=95 // pred_region
          %718 = dma.done [#allocation3], 256
        $region100: #{tpu_custom_call.1} parent=95 // pred_fallthru
          _
        // Predicated region
        $region101: #{tpu_custom_call.1} parent=95 // pred_check
          %p719 = pneg %p91
        $region102: #{tpu_custom_call.1} parent=95 // pred_check_branch
          %721 = sbr.rel (%p719) target = $region104
        $region103: #{tpu_custom_call.1} parent=95 // pred_region
          %722 = dma.done [#allocation6], 128
        $region104: #{tpu_custom_call.1} parent=95 // pred_fallthru
          _
        %s723 = sand.u32 %s33, 1
        %s724 = scalar_lea.sflag [#allocation3], %s723
        %s725 = sand.u32 %s260, 1
        %s726 = smul.addr %s725, 16
        %s727 = scalar_lea.vmem [#allocation7], %s726
        // Predicated region
        $region105: #{tpu_custom_call.1} parent=95 // pred_check
          %p728 = pneg %p273
        $region106: #{tpu_custom_call.1} parent=95 // pred_check_branch
          %730 = sbr.rel (%p728) target = $region108
        $region107: #{tpu_custom_call.1} parent=95 // pred_region
          %731 = dma.done %s724, 256
        $region108: #{tpu_custom_call.1} parent=95 // pred_fallthru
          _
        %s732 = sand.u32 %s33, 1
        %s733 = scalar_lea.sflag [#allocation3], %s732
        %s734 = sand.u32 %s364, 1
        %s735 = smul.addr %s734, 16
        %s736 = scalar_lea.vmem [#allocation8], %s735
        // Predicated region
        $region109: #{tpu_custom_call.1} parent=95 // pred_check
          %p737 = pneg %p377
        $region110: #{tpu_custom_call.1} parent=95 // pred_check_branch
          %739 = sbr.rel (%p737) target = $region112
        $region111: #{tpu_custom_call.1} parent=95 // pred_region
          %740 = dma.done %s733, 256
        $region112: #{tpu_custom_call.1} parent=95 // pred_fallthru
          _
        %p741 = pneg %p49
        %p742 = pneg %p46
        %p743 = pneg %p70
        %p744 = pneg %p67
        %p745 = pneg %p91
        %p746 = pneg %p88
        %p747 = scmp.lt.s32.totalorder %s33, 1
        %s748 = scalar_select %p747, %s33, 1
        %s749 = smul.addr %s748, 4
        %s750 = smul.addr %s749, 4
        %s751 = scalar_lea.vmem %s3, %s750
        %p752 = pneg %p117
        %p753 = pneg %p114
        %p754 = scmp.lt.s32.totalorder %s33, 1
        %s755 = scalar_select %p754, %s33, 1
        %s756 = smul.addr %s755, 4
        %s757 = smul.addr %s756, 4
        %s758 = scalar_lea.vmem %s4, %s757
        %p759 = pneg %p143
        %p760 = pneg %p140
        %p761 = scmp.lt.s32.totalorder %s33, 1
        %s762 = scalar_select %p761, %s33, 1
        %s763 = smul.addr %s762, 4
        %s764 = smul.addr %s763, 4
        %s765 = scalar_lea.vmem %s5, %s764
        %p766 = pneg %p169
        %p767 = pneg %p166
        %p768 = scmp.lt.s32.totalorder %s33, 1
        %s769 = scalar_select %p768, %s33, 1
        %s770 = scalar_lea.vmem %s6, %s769
        %p771 = pneg %p195
        %p772 = pneg %p192
        %p773 = scmp.lt.s32.totalorder %s33, 1
        %s774 = scalar_select %p773, %s33, 1
        %s775 = scalar_lea.vmem %s7, %s774
        %p776 = pneg %p221
        %p777 = pneg %p218
        %p778 = scmp.lt.s32.totalorder %s33, 1
        %s779 = scalar_select %p778, %s33, 1
        %s780 = scalar_lea.vmem %s8, %s779
        %p781 = pneg %p247
        %p782 = pneg %p244
        %s783 = sand.u32 %s33, 1
        %s784 = scalar_lea.sflag [#allocation3], %s783
        %s785 = sand.u32 %s260, 1
        %s786 = smul.addr %s785, 16
        %s787 = scalar_lea.vmem [#allocation7], %s786
        %p788 = pneg %p273
        %p789 = pneg %p270
        %p790 = scmp.lt.s32.totalorder %s33, 1
        %s791 = scalar_select %p790, %s33, 1
        %s792 = scalar_lea.vmem %s10, %s791
        %p793 = pneg %p299
        %p794 = pneg %p296
        %p795 = scmp.lt.s32.totalorder %s33, 1
        %s796 = scalar_select %p795, %s33, 1
        %s797 = scalar_lea.vmem %s11, %s796
        %p798 = pneg %p325
        %p799 = pneg %p322
        %p800 = scmp.lt.s32.totalorder %s33, 1
        %s801 = scalar_select %p800, %s33, 1
        %s802 = scalar_lea.vmem %s12, %s801
        %p803 = pneg %p351
        %p804 = pneg %p348
        %s805 = sand.u32 %s33, 1
        %s806 = scalar_lea.sflag [#allocation3], %s805
        %s807 = sand.u32 %s364, 1
        %s808 = smul.addr %s807, 16
        %s809 = scalar_lea.vmem [#allocation8], %s808
        %p810 = pneg %p377
        %p811 = pneg %p374
        %p812 = scmp.lt.s32.totalorder %s33, 1
        %s813 = scalar_select %p812, %s33, 1
        %s814 = scalar_lea.vmem %s14, %s813
        %p815 = pneg %p403
        %p816 = pneg %p400
        %p817 = scmp.lt.s32.totalorder %s33, 1
        %s818 = scalar_select %p817, %s33, 1
        %s819 = smul.addr %s818, 8
        %s820 = smul.addr %s819, 4
        %s821 = scalar_lea.vmem %s15, %s820
        %p822 = pneg %p429
        %p823 = pneg %p426
        %p824 = scmp.lt.s32.totalorder %s33, 1
        %s825 = scalar_select %p824, %s33, 1
        %s826 = scalar_lea.vmem %s16, %s825
        %p827 = pneg %p455
        %p828 = pneg %p452
        %p829 = scmp.lt.s32.totalorder %s33, 1
        %s830 = scalar_select %p829, %s33, 1
        %s831 = scalar_lea.vmem %s17, %s830
        %p832 = pneg %p481
        %p833 = pneg %p478
        %p834 = scmp.lt.s32.totalorder %s33, 1
        %s835 = scalar_select %p834, %s33, 1
        %s836 = scalar_lea.vmem %s18, %s835
        %p837 = pneg %p507
        %p838 = pneg %p504
        %p839 = pneg %p528
        %p840 = pneg %p525
        %p841 = scmp.lt.s32.totalorder %s33, 1
        %s842 = scalar_select %p841, %s33, 1
        %s843 = smul.addr %s842, 4
        %s844 = smul.addr %s843, 4
        %s845 = scalar_lea.vmem %s3, %s844
        %p846 = scmp.lt.s32.totalorder %s33, 1
        %s847 = scalar_select %p846, %s33, 1
        %s848 = smul.addr %s847, 4
        %s849 = smul.addr %s848, 4
        %s850 = scalar_lea.vmem %s4, %s849
        %p851 = scmp.lt.s32.totalorder %s33, 1
        %s852 = scalar_select %p851, %s33, 1
        %s853 = smul.addr %s852, 4
        %s854 = smul.addr %s853, 4
        %s855 = scalar_lea.vmem %s5, %s854
        %p856 = scmp.lt.s32.totalorder %s33, 1
        %s857 = scalar_select %p856, %s33, 1
        %s858 = scalar_lea.vmem %s6, %s857
        %p859 = scmp.lt.s32.totalorder %s33, 1
        %s860 = scalar_select %p859, %s33, 1
        %s861 = scalar_lea.vmem %s7, %s860
        %p862 = scmp.lt.s32.totalorder %s33, 1
        %s863 = scalar_select %p862, %s33, 1
        %s864 = scalar_lea.vmem %s8, %s863
        %p865 = scmp.lt.s32.totalorder %s33, 1
        %s866 = scalar_select %p865, %s33, 1
        %s867 = scalar_lea.vmem %s10, %s866
        %p868 = scmp.lt.s32.totalorder %s33, 1
        %s869 = scalar_select %p868, %s33, 1
        %s870 = scalar_lea.vmem %s11, %s869
        %p871 = scmp.lt.s32.totalorder %s33, 1
        %s872 = scalar_select %p871, %s33, 1
        %s873 = scalar_lea.vmem %s12, %s872
        %p874 = scmp.lt.s32.totalorder %s33, 1
        %s875 = scalar_select %p874, %s33, 1
        %s876 = scalar_lea.vmem %s14, %s875
        %p877 = scmp.lt.s32.totalorder %s33, 1
        %s878 = scalar_select %p877, %s33, 1
        %s879 = smul.addr %s878, 8
        %s880 = smul.addr %s879, 4
        %s881 = scalar_lea.vmem %s15, %s880
        %p882 = scmp.lt.s32.totalorder %s33, 1
        %s883 = scalar_select %p882, %s33, 1
        %s884 = scalar_lea.vmem %s16, %s883
        %p885 = scmp.lt.s32.totalorder %s33, 1
        %s886 = scalar_select %p885, %s33, 1
        %s887 = scalar_lea.vmem %s17, %s886
        %p888 = scmp.lt.s32.totalorder %s33, 1
        %s889 = scalar_select %p888, %s33, 1
        %s890 = scalar_lea.vmem %s18, %s889
        %p892 = scmp.eq.s32.totalorder %s33, 0
        // Predicated region
        $region113: #{tpu_custom_call.1} parent=95 // pred_check
          %p893 = pneg %p892
        $region114: #{tpu_custom_call.1} parent=95 // pred_check_branch
          %895 = sbr.rel (%p893) target = $region116
        $region115: #{tpu_custom_call.1} parent=95 // pred_region
          %v896 = vld [vmem:[#allocation2] sm:$0xff]
          %v897 = vld [vmem:[#allocation2 + $0x8] sm:$0xff]
          %v898 = vmul.f32 %v896, 5.656854
          %v899 = vmul.f32 %v897, 5.656854
          %v900 = vld [vmem:[%s1] sm:$0x3]
          %v903 = vunpack.c.l.s4 1966171168
          %v904 = vunpack.c.0.s8 %v903
          %v905 = vlaneseq
          %v906 = vshrl.u32 %v905, 7
          %v907 = vsub.s32 %v904, %v906
          %v908 = vrot.slane %v900, %v907
          %v909 = vcombine.high %v908, %v908
          %v911 = vunpack.c.l.s4 1966171168
          %v912 = vunpack.c.0.s8 %v911
          %v913 = vlaneseq
          %v914 = vshrl.u32 %v913, 7
          %v915 = vsub.s32 %v912, %v914
          %v916 = vrot.slane %v908, %v915
          %v918 = vunpack.c.l.s4 1966171168
          %v919 = vunpack.c.0.s8 %v918
          %v920 = vlaneseq
          %v921 = vshrl.u32 %v920, 7
          %v922 = vsub.s32 %v919, %v921
          %v923 = vrot.slane %v909, %v922
          %v924 = vlaneseq
          %v925 = vshrl.u32 %v924, 7
          %v926 = vsub.s32 0, %v925
          %v927 = vrot.slane %v916, %v926
          %v928 = vlaneseq
          %v929 = vshrl.u32 %v928, 7
          %v930 = vsub.s32 0, %v929
          %v931 = vrot.slane %v923, %v930
          %v934 = vadd.f32 %v898, %v927
          %v935 = vadd.f32 %v899, %v931
          %vm936 = vcmask 261120
          %937 = vst.msk [vmem:[#allocation9] sm:$0xff] %vm936, %v934
          %938 = vst.msk [vmem:[#allocation9 + $0x8] sm:$0xff] %vm936, %v935
        $region116: #{tpu_custom_call.1} parent=95 // pred_fallthru
          _
        %v939 = vld [vmem:[#allocation9] sm:$0xff]
        %v940 = vld [vmem:[#allocation9 + $0x8] sm:$0xff]
        %v941 = vpack.c.bf16 %v940, %v939
        %v942 = vld [vmem:[%s845] sm:$0xf]
        %v943 = vld [vmem:[%s845 + $0x4] sm:$0xf]
        %v944 = vld [vmem:[%s845 + $0x8] sm:$0xf]
        %v945 = vld [vmem:[%s845 + $0xc] sm:$0xf]
        %v946 = vld [vmem:[%s858] sm:$0x1]
        %v948 = vlaneseq
        %v949 = vshrl.u32 %v948, 7
        %v950 = vsub.s32 0, %v949
        %v951 = vrot.slane %v946, %v950
        %v957 = vunpack.c.l.b16 %v942
        %v958 = vunpack.c.l.b16 %v943
        %v959 = vunpack.c.l.b16 %v944
        %v960 = vunpack.c.l.b16 %v945
        %v961 = vpack.c.b16 %v958, %v957
        %v962 = vpack.c.b16 %v960, %v959
        %vm965 = vcmask 261120
        %v967 = vsel %vm965, %v941, 0
        %969 = vmatprep.subr.bf16.mxu0 0
        %970 = vmatpush1.bf16.msra.mxu0 %v961
        %971 = vmatprep.subr.bf16.mxu0 0
        %972 = vmatpush1.bf16.msra.mxu0 %v962
        %973 = vmatprep.subr.bf16.mxu0 0
        %974 = vmatpush1.bf16.msra.mxu0 0
        %975 = vmatprep.subr.bf16.mxu0 0
        %976 = vmatpush1.bf16.msra.mxu0 0
        %977 = vmatprep.subr.bf16.mxu0 0
        %978 = vmatpush1.bf16.msra.mxu0 0
        %979 = vmatprep.subr.bf16.mxu0 0
        %980 = vmatpush1.bf16.msra.mxu0 0
        %981 = vmatprep.subr.bf16.mxu0 0
        %982 = vmatpush1.bf16.msra.mxu0 0
        %983 = vmatprep.subr.bf16.mxu0 0
        %984 = vmatpush1.bf16.msra.mxu0 0
        %985 = vmatprep.subr.bf16.mxu0 0
        %986 = vmatpush1.bf16.msra.mxu0 0
        %987 = vmatprep.subr.bf16.mxu0 0
        %988 = vmatpush1.bf16.msra.mxu0 0
        %989 = vmatprep.subr.bf16.mxu0 0
        %990 = vmatpush1.bf16.msra.mxu0 0
        %991 = vmatprep.subr.bf16.mxu0 0
        %992 = vmatpush1.bf16.msra.mxu0 0
        %993 = vmatprep.subr.bf16.mxu0 0
        %994 = vmatpush1.bf16.msra.mxu0 0
        %995 = vmatprep.subr.bf16.mxu0 0
        %996 = vmatpush1.bf16.msra.mxu0 0
        %997 = vmatprep.subr.bf16.mxu0 0
        %998 = vmatpush1.bf16.msra.mxu0 0
        %999 = vmatprep.subr.bf16.mxu0 0
        %1000 = vmatpush1.bf16.msra.mxu0 0
        %1001 = vmatprep.mubr.bf16.mxu0 0
        %1002 = vmatmul.mubr.bf16.gmra.mrb[0].mxu0 %v967
        %v1003 = vpop.f32.mrb[0].mxu0
        %v1004 = vadd.f32 %v951, %v1003
        %v1005 = vpop.f32.mrb[0].mxu0
        %v1006 = vpop.f32.mrb[0].mxu0
        %v1007 = vadd.f32 %v951, %v1006
        %v1008 = vpop.f32.mrb[0].mxu0
        %1009 = vdwg.mxu0
        %v1010 = vpack.c.bf16 %v1007, %v1004
        %v1012 = vunpack.c.l.b16 %v1010
        %v1013 = vunpack.c.h.b16 %v1010
        %v1014 = vpack.c.b16 %v1012, %v1012
        %v1015 = vpack.c.b16 %v1013, %v1013
        %v1016 = vld [vmem:[%s850] sm:$0xf]
        %v1017 = vld [vmem:[%s850 + $0x4] sm:$0xf]
        %v1018 = vld [vmem:[%s850 + $0x8] sm:$0xf]
        %v1019 = vld [vmem:[%s850 + $0xc] sm:$0xf]
        %v1020 = vld [vmem:[%s861] sm:$0x1]
        %v1022 = vlaneseq
        %v1023 = vshrl.u32 %v1022, 7
        %v1024 = vsub.s32 0, %v1023
        %v1025 = vrot.slane %v1020, %v1024
        %v1031 = vunpack.c.l.b16 %v1016
        %v1032 = vunpack.c.l.b16 %v1017
        %v1033 = vunpack.c.l.b16 %v1018
        %v1034 = vunpack.c.l.b16 %v1019
        %v1035 = vpack.c.b16 %v1032, %v1031
        %v1036 = vpack.c.b16 %v1034, %v1033
        %1039 = vmatprep.subr.bf16.mxu0 0
        %1040 = vmatpush1.bf16.msra.mxu0 %v1035
        %1041 = vmatprep.subr.bf16.mxu0 0
        %1042 = vmatpush1.bf16.msra.mxu0 %v1036
        %1043 = vmatprep.subr.bf16.mxu0 0
        %1044 = vmatpush1.bf16.msra.mxu0 0
        %1045 = vmatprep.subr.bf16.mxu0 0
        %1046 = vmatpush1.bf16.msra.mxu0 0
        %1047 = vmatprep.subr.bf16.mxu0 0
        %1048 = vmatpush1.bf16.msra.mxu0 0
        %1049 = vmatprep.subr.bf16.mxu0 0
        %1050 = vmatpush1.bf16.msra.mxu0 0
        %1051 = vmatprep.subr.bf16.mxu0 0
        %1052 = vmatpush1.bf16.msra.mxu0 0
        %1053 = vmatprep.subr.bf16.mxu0 0
        %1054 = vmatpush1.bf16.msra.mxu0 0
        %1055 = vmatprep.subr.bf16.mxu0 0
        %1056 = vmatpush1.bf16.msra.mxu0 0
        %1057 = vmatprep.subr.bf16.mxu0 0
        %1058 = vmatpush1.bf16.msra.mxu0 0
        %1059 = vmatprep.subr.bf16.mxu0 0
        %1060 = vmatpush1.bf16.msra.mxu0 0
        %1061 = vmatprep.subr.bf16.mxu0 0
        %1062 = vmatpush1.bf16.msra.mxu0 0
        %1063 = vmatprep.subr.bf16.mxu0 0
        %1064 = vmatpush1.bf16.msra.mxu0 0
        %1065 = vmatprep.subr.bf16.mxu0 0
        %1066 = vmatpush1.bf16.msra.mxu0 0
        %1067 = vmatprep.subr.bf16.mxu0 0
        %1068 = vmatpush1.bf16.msra.mxu0 0
        %1069 = vmatprep.subr.bf16.mxu0 0
        %1070 = vmatpush1.bf16.msra.mxu0 0
        %1071 = vmatprep.mubr.bf16.mxu0 0
        %1072 = vmatmul.mubr.bf16.gmra.mrb[0].mxu0 %v967
        %v1073 = vpop.f32.mrb[0].mxu0
        %v1074 = vadd.f32 %v1025, %v1073
        %v1075 = vpop.f32.mrb[0].mxu0
        %v1076 = vpop.f32.mrb[0].mxu0
        %v1077 = vadd.f32 %v1025, %v1076
        %v1078 = vpop.f32.mrb[0].mxu0
        %1079 = vdwg.mxu0
        %v1080 = vpack.c.bf16 %v1077, %v1074
        %v1082 = vunpack.c.l.b16 %v1080
        %v1083 = vunpack.c.h.b16 %v1080
        %v1084 = vpack.c.b16 %v1082, %v1082
        %v1085 = vpack.c.b16 %v1083, %v1083
        %v1086 = vld [vmem:[%s855] sm:$0xf]
        %v1087 = vld [vmem:[%s855 + $0x4] sm:$0xf]
        %v1088 = vld [vmem:[%s855 + $0x8] sm:$0xf]
        %v1089 = vld [vmem:[%s855 + $0xc] sm:$0xf]
        %v1090 = vld [vmem:[%s864] sm:$0x1]
        %v1092 = vlaneseq
        %v1093 = vshrl.u32 %v1092, 7
        %v1094 = vsub.s32 0, %v1093
        %v1095 = vrot.slane %v1090, %v1094
        %v1101 = vunpack.c.l.b16 %v1086
        %v1102 = vunpack.c.l.b16 %v1087
        %v1103 = vunpack.c.l.b16 %v1088
        %v1104 = vunpack.c.l.b16 %v1089
        %v1105 = vpack.c.b16 %v1102, %v1101
        %v1106 = vpack.c.b16 %v1104, %v1103
        %1109 = vmatprep.subr.bf16.mxu0 0
        %1110 = vmatpush1.bf16.msra.mxu0 %v1105
        %1111 = vmatprep.subr.bf16.mxu0 0
        %1112 = vmatpush1.bf16.msra.mxu0 %v1106
        %1113 = vmatprep.subr.bf16.mxu0 0
        %1114 = vmatpush1.bf16.msra.mxu0 0
        %1115 = vmatprep.subr.bf16.mxu0 0
        %1116 = vmatpush1.bf16.msra.mxu0 0
        %1117 = vmatprep.subr.bf16.mxu0 0
        %1118 = vmatpush1.bf16.msra.mxu0 0
        %1119 = vmatprep.subr.bf16.mxu0 0
        %1120 = vmatpush1.bf16.msra.mxu0 0
        %1121 = vmatprep.subr.bf16.mxu0 0
        %1122 = vmatpush1.bf16.msra.mxu0 0
        %1123 = vmatprep.subr.bf16.mxu0 0
        %1124 = vmatpush1.bf16.msra.mxu0 0
        %1125 = vmatprep.subr.bf16.mxu0 0
        %1126 = vmatpush1.bf16.msra.mxu0 0
        %1127 = vmatprep.subr.bf16.mxu0 0
        %1128 = vmatpush1.bf16.msra.mxu0 0
        %1129 = vmatprep.subr.bf16.mxu0 0
        %1130 = vmatpush1.bf16.msra.mxu0 0
        %1131 = vmatprep.subr.bf16.mxu0 0
        %1132 = vmatpush1.bf16.msra.mxu0 0
        %1133 = vmatprep.subr.bf16.mxu0 0
        %1134 = vmatpush1.bf16.msra.mxu0 0
        %1135 = vmatprep.subr.bf16.mxu0 0
        %1136 = vmatpush1.bf16.msra.mxu0 0
        %1137 = vmatprep.subr.bf16.mxu0 0
        %1138 = vmatpush1.bf16.msra.mxu0 0
        %1139 = vmatprep.subr.bf16.mxu0 0
        %1140 = vmatpush1.bf16.msra.mxu0 0
        %1141 = vmatprep.mubr.bf16.mxu0 0
        %1142 = vmatmul.mubr.bf16.gmra.mrb[0].mxu0 %v967
        %v1143 = vpop.f32.mrb[0].mxu0
        %v1144 = vadd.f32 %v1095, %v1143
        %v1145 = vpop.f32.mrb[0].mxu0
        %v1146 = vpop.f32.mrb[0].mxu0
        %v1147 = vadd.f32 %v1095, %v1146
        %v1148 = vpop.f32.mrb[0].mxu0
        %1149 = vdwg.mxu0
        %v1150 = vpack.c.bf16 %v1147, %v1144
        %v1152 = vunpack.c.l.b16 %v1150
        %v1153 = vunpack.c.h.b16 %v1150
        %v1154 = vpack.c.b16 %v1152, %v1152
        %v1155 = vpack.c.b16 %v1153, %v1153
        %v1156 = vld [vmem:[#allocation5] sm:$0xff]
        %vm1157 = vcmask 64512
        %v1159 = vsel %vm1157, %v1014, 0
        %v1162 = vsel %vm1157, %v1084, 0
        %1164 = vmatprep.subr.bf16.mxu0 0
        %1165 = vmatpush1.bf16.xpose.msra.mxu0 %v1162
        %1166 = vmatprep.subr.bf16.mxu0 0
        %1167 = vmatpush1.bf16.xpose.msra.mxu0 0
        %1168 = vmatprep.subr.bf16.mxu0 0
        %1169 = vmatpush1.bf16.xpose.msra.mxu0 0
        %1170 = vmatprep.subr.bf16.mxu0 0
        %1171 = vmatpush1.bf16.xpose.msra.mxu0 0
        %1172 = vmatprep.subr.bf16.mxu0 0
        %1173 = vmatpush1.bf16.xpose.msra.mxu0 0
        %1174 = vmatprep.subr.bf16.mxu0 0
        %1175 = vmatpush1.bf16.xpose.msra.mxu0 0
        %1176 = vmatprep.subr.bf16.mxu0 0
        %1177 = vmatpush1.bf16.xpose.msra.mxu0 0
        %1178 = vmatprep.subr.bf16.mxu0 0
        %1179 = vmatpush1.bf16.xpose.msra.mxu0 0
        %1180 = vmatprep.subr.bf16.mxu0 0
        %1181 = vmatpush1.bf16.xpose.msra.mxu0 0
        %1182 = vmatprep.subr.bf16.mxu0 0
        %1183 = vmatpush1.bf16.xpose.msra.mxu0 0
        %1184 = vmatprep.subr.bf16.mxu0 0
        %1185 = vmatpush1.bf16.xpose.msra.mxu0 0
        %1186 = vmatprep.subr.bf16.mxu0 0
        %1187 = vmatpush1.bf16.xpose.msra.mxu0 0
        %1188 = vmatprep.subr.bf16.mxu0 0
        %1189 = vmatpush1.bf16.xpose.msra.mxu0 0
        %1190 = vmatprep.subr.bf16.mxu0 0
        %1191 = vmatpush1.bf16.xpose.msra.mxu0 0
        %1192 = vmatprep.subr.bf16.mxu0 0
        %1193 = vmatpush1.bf16.xpose.msra.mxu0 0
        %1194 = vmatprep.subr.bf16.mxu0 0
        %1195 = vmatpush1.bf16.xpose.msra.mxu0 0
        %1196 = vmatprep.mubr.bf16.mxu0 0
        %1197 = vmatmul.mubr.bf16.gmra.mrb[0].mxu0 %v1159
        %v1198 = vpop.f32.mrb[0].mxu0
        %v1199 = vadd.f32 %v1156, %v1198
        %v1200 = vpop.f32.mrb[0].mxu0
        %v1201 = vpop.f32.mrb[0].mxu0
        %v1202 = vpop.f32.mrb[0].mxu0
        %1203 = vdwg.mxu0
        %v1205 = vsel %vm1157, %v1015, 0
        %v1208 = vsel %vm1157, %v1085, 0
        %1210 = vmatprep.subr.bf16.mxu0 0
        %1211 = vmatpush1.bf16.xpose.msra.mxu0 %v1208
        %1212 = vmatprep.subr.bf16.mxu0 0
        %1213 = vmatpush1.bf16.xpose.msra.mxu0 0
        %1214 = vmatprep.subr.bf16.mxu0 0
        %1215 = vmatpush1.bf16.xpose.msra.mxu0 0
        %1216 = vmatprep.subr.bf16.mxu0 0
        %1217 = vmatpush1.bf16.xpose.msra.mxu0 0
        %1218 = vmatprep.subr.bf16.mxu0 0
        %1219 = vmatpush1.bf16.xpose.msra.mxu0 0
        %1220 = vmatprep.subr.bf16.mxu0 0
        %1221 = vmatpush1.bf16.xpose.msra.mxu0 0
        %1222 = vmatprep.subr.bf16.mxu0 0
        %1223 = vmatpush1.bf16.xpose.msra.mxu0 0
        %1224 = vmatprep.subr.bf16.mxu0 0
        %1225 = vmatpush1.bf16.xpose.msra.mxu0 0
        %1226 = vmatprep.subr.bf16.mxu0 0
        %1227 = vmatpush1.bf16.xpose.msra.mxu0 0
        %1228 = vmatprep.subr.bf16.mxu0 0
        %1229 = vmatpush1.bf16.xpose.msra.mxu0 0
        %1230 = vmatprep.subr.bf16.mxu0 0
        %1231 = vmatpush1.bf16.xpose.msra.mxu0 0
        %1232 = vmatprep.subr.bf16.mxu0 0
        %1233 = vmatpush1.bf16.xpose.msra.mxu0 0
        %1234 = vmatprep.subr.bf16.mxu0 0
        %1235 = vmatpush1.bf16.xpose.msra.mxu0 0
        %1236 = vmatprep.subr.bf16.mxu0 0
        %1237 = vmatpush1.bf16.xpose.msra.mxu0 0
        %1238 = vmatprep.subr.bf16.mxu0 0
        %1239 = vmatpush1.bf16.xpose.msra.mxu0 0
        %1240 = vmatprep.subr.bf16.mxu0 0
        %1241 = vmatpush1.bf16.xpose.msra.mxu0 0
        %1242 = vmatprep.mubr.bf16.mxu0 0
        %1243 = vmatmul.mubr.bf16.gmra.mrb[0].mxu0 %v1205
        %v1244 = vpop.f32.mrb[0].mxu0
        %v1245 = vadd.f32 %v1156, %v1244
        %v1246 = vpop.f32.mrb[0].mxu0
        %v1247 = vpop.f32.mrb[0].mxu0
        %v1248 = vpop.f32.mrb[0].mxu0
        %1249 = vdwg.mxu0
        %v1250 = vsel %vm1157, %v1199, -inf
        %1251 = vmax.xlane.f32.xlu0 %v1250
        %v1252 = vpop.xlane.xlu0 %1251
        %v1253 = vsel %vm1157, %v1245, -inf
        %1254 = vmax.xlane.f32.xlu0 %v1253
        %v1255 = vpop.xlane.xlu0 %1254
        %v1256 = vsub.f32 %v1199, %v1252
        %v1257 = vsub.f32 %v1245, %v1255
        %v1258 = vmul.f32 %v1256, 1.442695
        %v1259 = vpow.pop %v1258
        %v1260 = vmul.f32 %v1257, 1.442695
        %v1261 = vpow.pop %v1260
        %v1262 = vsel %vm1157, %v1259, 0.0
        %1263 = vadd.xlane.f32.xlu0 %v1262
        %v1264 = vpop.xlane.xlu0 %1263
        %v1265 = vsel %vm1157, %v1261, 0.0
        %1266 = vadd.xlane.f32.xlu0 %v1265
        %v1267 = vpop.xlane.xlu0 %1266
        %v1268 = vrcp.pop %v1264
        %v1269 = vrcp.pop %v1267
        %v1270 = vmul.f32 %v1259, %v1268
        %v1271 = vmul.f32 %v1261, %v1269
        %v1272 = vpack.c.bf16 %v1270, %v1270
        %v1273 = vpack.c.bf16 %v1271, %v1271
        %v1275 = vsel %vm1157, %v1272, 0
        %vm1277 = vcmask 1043456
        %v1279 = vsel %vm1277, %v1154, 0
        %1281 = vmatprep.subr.bf16.mxu0 0
        %1282 = vmatpush1.bf16.msra.mxu0 %v1279
        %1283 = vmatprep.subr.bf16.mxu0 0
        %1284 = vmatpush1.bf16.msra.mxu0 0
        %1285 = vmatprep.subr.bf16.mxu0 0
        %1286 = vmatpush1.bf16.msra.mxu0 0
        %1287 = vmatprep.subr.bf16.mxu0 0
        %1288 = vmatpush1.bf16.msra.mxu0 0
        %1289 = vmatprep.subr.bf16.mxu0 0
        %1290 = vmatpush1.bf16.msra.mxu0 0
        %1291 = vmatprep.subr.bf16.mxu0 0
        %1292 = vmatpush1.bf16.msra.mxu0 0
        %1293 = vmatprep.subr.bf16.mxu0 0
        %1294 = vmatpush1.bf16.msra.mxu0 0
        %1295 = vmatprep.subr.bf16.mxu0 0
        %1296 = vmatpush1.bf16.msra.mxu0 0
        %1297 = vmatprep.subr.bf16.mxu0 0
        %1298 = vmatpush1.bf16.msra.mxu0 0
        %1299 = vmatprep.subr.bf16.mxu0 0
        %1300 = vmatpush1.bf16.msra.mxu0 0
        %1301 = vmatprep.subr.bf16.mxu0 0
        %1302 = vmatpush1.bf16.msra.mxu0 0
        %1303 = vmatprep.subr.bf16.mxu0 0
        %1304 = vmatpush1.bf16.msra.mxu0 0
        %1305 = vmatprep.subr.bf16.mxu0 0
        %1306 = vmatpush1.bf16.msra.mxu0 0
        %1307 = vmatprep.subr.bf16.mxu0 0
        %1308 = vmatpush1.bf16.msra.mxu0 0
        %1309 = vmatprep.subr.bf16.mxu0 0
        %1310 = vmatpush1.bf16.msra.mxu0 0
        %1311 = vmatprep.subr.bf16.mxu0 0
        %1312 = vmatpush1.bf16.msra.mxu0 0
        %1313 = vmatprep.mubr.bf16.mxu0 0
        %1314 = vmatmul.mubr.bf16.gmra.mrb[0].mxu0 %v1275
        %v1315 = vpop.f32.mrb[0].mxu0
        %v1316 = vadd.f32 0.0, %v1315
        %v1317 = vpop.f32.mrb[0].mxu0
        %v1318 = vpop.f32.mrb[0].mxu0
        %v1319 = vpop.f32.mrb[0].mxu0
        %1320 = vdwg.mxu0
        %v1322 = vsel %vm1157, %v1273, 0
        %v1325 = vsel %vm1277, %v1155, 0
        %1327 = vmatprep.subr.bf16.mxu0 0
        %1328 = vmatpush1.bf16.msra.mxu0 %v1325
        %1329 = vmatprep.subr.bf16.mxu0 0
        %1330 = vmatpush1.bf16.msra.mxu0 0
        %1331 = vmatprep.subr.bf16.mxu0 0
        %1332 = vmatpush1.bf16.msra.mxu0 0
        %1333 = vmatprep.subr.bf16.mxu0 0
        %1334 = vmatpush1.bf16.msra.mxu0 0
        %1335 = vmatprep.subr.bf16.mxu0 0
        %1336 = vmatpush1.bf16.msra.mxu0 0
        %1337 = vmatprep.subr.bf16.mxu0 0
        %1338 = vmatpush1.bf16.msra.mxu0 0
        %1339 = vmatprep.subr.bf16.mxu0 0
        %1340 = vmatpush1.bf16.msra.mxu0 0
        %1341 = vmatprep.subr.bf16.mxu0 0
        %1342 = vmatpush1.bf16.msra.mxu0 0
        %1343 = vmatprep.subr.bf16.mxu0 0
        %1344 = vmatpush1.bf16.msra.mxu0 0
        %1345 = vmatprep.subr.bf16.mxu0 0
        %1346 = vmatpush1.bf16.msra.mxu0 0
        %1347 = vmatprep.subr.bf16.mxu0 0
        %1348 = vmatpush1.bf16.msra.mxu0 0
        %1349 = vmatprep.subr.bf16.mxu0 0
        %1350 = vmatpush1.bf16.msra.mxu0 0
        %1351 = vmatprep.subr.bf16.mxu0 0
        %1352 = vmatpush1.bf16.msra.mxu0 0
        %1353 = vmatprep.subr.bf16.mxu0 0
        %1354 = vmatpush1.bf16.msra.mxu0 0
        %1355 = vmatprep.subr.bf16.mxu0 0
        %1356 = vmatpush1.bf16.msra.mxu0 0
        %1357 = vmatprep.subr.bf16.mxu0 0
        %1358 = vmatpush1.bf16.msra.mxu0 0
        %1359 = vmatprep.mubr.bf16.mxu0 0
        %1360 = vmatmul.mubr.bf16.gmra.mrb[0].mxu0 %v1322
        %v1361 = vpop.f32.mrb[0].mxu0
        %v1362 = vadd.f32 0.0, %v1361
        %v1363 = vpop.f32.mrb[0].mxu0
        %v1364 = vpop.f32.mrb[0].mxu0
        %v1365 = vpop.f32.mrb[0].mxu0
        %1366 = vdwg.mxu0
        %1367 = vrot.lane.b32.xlu0 %v1014, 120
        %v1368 = vpop.permute.xlu0 %1367
        %1369 = vrot.lane.b32.xlu0 %v1084, 120
        %v1370 = vpop.permute.xlu0 %1369
        %v1372 = vsel %vm1157, %v1368, 0
        %v1375 = vsel %vm1157, %v1370, 0
        %1377 = vmatprep.subr.bf16.mxu0 0
        %1378 = vmatpush1.bf16.xpose.msra.mxu0 %v1375
        %1379 = vmatprep.subr.bf16.mxu0 0
        %1380 = vmatpush1.bf16.xpose.msra.mxu0 0
        %1381 = vmatprep.subr.bf16.mxu0 0
        %1382 = vmatpush1.bf16.xpose.msra.mxu0 0
        %1383 = vmatprep.subr.bf16.mxu0 0
        %1384 = vmatpush1.bf16.xpose.msra.mxu0 0
        %1385 = vmatprep.subr.bf16.mxu0 0
        %1386 = vmatpush1.bf16.xpose.msra.mxu0 0
        %1387 = vmatprep.subr.bf16.mxu0 0
        %1388 = vmatpush1.bf16.xpose.msra.mxu0 0
        %1389 = vmatprep.subr.bf16.mxu0 0
        %1390 = vmatpush1.bf16.xpose.msra.mxu0 0
        %1391 = vmatprep.subr.bf16.mxu0 0
        %1392 = vmatpush1.bf16.xpose.msra.mxu0 0
        %1393 = vmatprep.subr.bf16.mxu0 0
        %1394 = vmatpush1.bf16.xpose.msra.mxu0 0
        %1395 = vmatprep.subr.bf16.mxu0 0
        %1396 = vmatpush1.bf16.xpose.msra.mxu0 0
        %1397 = vmatprep.subr.bf16.mxu0 0
        %1398 = vmatpush1.bf16.xpose.msra.mxu0 0
        %1399 = vmatprep.subr.bf16.mxu0 0
        %1400 = vmatpush1.bf16.xpose.msra.mxu0 0
        %1401 = vmatprep.subr.bf16.mxu0 0
        %1402 = vmatpush1.bf16.xpose.msra.mxu0 0
        %1403 = vmatprep.subr.bf16.mxu0 0
        %1404 = vmatpush1.bf16.xpose.msra.mxu0 0
        %1405 = vmatprep.subr.bf16.mxu0 0
        %1406 = vmatpush1.bf16.xpose.msra.mxu0 0
        %1407 = vmatprep.subr.bf16.mxu0 0
        %1408 = vmatpush1.bf16.xpose.msra.mxu0 0
        %1409 = vmatprep.mubr.bf16.mxu0 0
        %1410 = vmatmul.mubr.bf16.gmra.mrb[0].mxu0 %v1372
        %v1411 = vpop.f32.mrb[0].mxu0
        %v1412 = vadd.f32 %v1156, %v1411
        %v1413 = vpop.f32.mrb[0].mxu0
        %v1414 = vpop.f32.mrb[0].mxu0
        %v1415 = vpop.f32.mrb[0].mxu0
        %1416 = vdwg.mxu0
        %1417 = vrot.lane.b32.xlu0 %v1015, 120
        %v1418 = vpop.permute.xlu0 %1417
        %1419 = vrot.lane.b32.xlu0 %v1085, 120
        %v1420 = vpop.permute.xlu0 %1419
        %v1422 = vsel %vm1157, %v1418, 0
        %v1425 = vsel %vm1157, %v1420, 0
        %1427 = vmatprep.subr.bf16.mxu0 0
        %1428 = vmatpush1.bf16.xpose.msra.mxu0 %v1425
        %1429 = vmatprep.subr.bf16.mxu0 0
        %1430 = vmatpush1.bf16.xpose.msra.mxu0 0
        %1431 = vmatprep.subr.bf16.mxu0 0
        %1432 = vmatpush1.bf16.xpose.msra.mxu0 0
        %1433 = vmatprep.subr.bf16.mxu0 0
        %1434 = vmatpush1.bf16.xpose.msra.mxu0 0
        %1435 = vmatprep.subr.bf16.mxu0 0
        %1436 = vmatpush1.bf16.xpose.msra.mxu0 0
        %1437 = vmatprep.subr.bf16.mxu0 0
        %1438 = vmatpush1.bf16.xpose.msra.mxu0 0
        %1439 = vmatprep.subr.bf16.mxu0 0
        %1440 = vmatpush1.bf16.xpose.msra.mxu0 0
        %1441 = vmatprep.subr.bf16.mxu0 0
        %1442 = vmatpush1.bf16.xpose.msra.mxu0 0
        %1443 = vmatprep.subr.bf16.mxu0 0
        %1444 = vmatpush1.bf16.xpose.msra.mxu0 0
        %1445 = vmatprep.subr.bf16.mxu0 0
        %1446 = vmatpush1.bf16.xpose.msra.mxu0 0
        %1447 = vmatprep.subr.bf16.mxu0 0
        %1448 = vmatpush1.bf16.xpose.msra.mxu0 0
        %1449 = vmatprep.subr.bf16.mxu0 0
        %1450 = vmatpush1.bf16.xpose.msra.mxu0 0
        %1451 = vmatprep.subr.bf16.mxu0 0
        %1452 = vmatpush1.bf16.xpose.msra.mxu0 0
        %1453 = vmatprep.subr.bf16.mxu0 0
        %1454 = vmatpush1.bf16.xpose.msra.mxu0 0
        %1455 = vmatprep.subr.bf16.mxu0 0
        %1456 = vmatpush1.bf16.xpose.msra.mxu0 0
        %1457 = vmatprep.subr.bf16.mxu0 0
        %1458 = vmatpush1.bf16.xpose.msra.mxu0 0
        %1459 = vmatprep.mubr.bf16.mxu0 0
        %1460 = vmatmul.mubr.bf16.gmra.mrb[0].mxu0 %v1422
        %v1461 = vpop.f32.mrb[0].mxu0
        %v1462 = vadd.f32 %v1156, %v1461
        %v1463 = vpop.f32.mrb[0].mxu0
        %v1464 = vpop.f32.mrb[0].mxu0
        %v1465 = vpop.f32.mrb[0].mxu0
        %1466 = vdwg.mxu0
        %v1467 = vsel %vm1157, %v1412, -inf
        %1468 = vmax.xlane.f32.xlu0 %v1467
        %v1469 = vpop.xlane.xlu0 %1468
        %v1470 = vsel %vm1157, %v1462, -inf
        %1471 = vmax.xlane.f32.xlu0 %v1470
        %v1472 = vpop.xlane.xlu0 %1471
        %v1473 = vsub.f32 %v1412, %v1469
        %v1474 = vsub.f32 %v1462, %v1472
        %v1475 = vmul.f32 %v1473, 1.442695
        %v1476 = vpow.pop %v1475
        %v1477 = vmul.f32 %v1474, 1.442695
        %v1478 = vpow.pop %v1477
        %v1479 = vsel %vm1157, %v1476, 0.0
        %1480 = vadd.xlane.f32.xlu0 %v1479
        %v1481 = vpop.xlane.xlu0 %1480
        %v1482 = vsel %vm1157, %v1478, 0.0
        %1483 = vadd.xlane.f32.xlu0 %v1482
        %v1484 = vpop.xlane.xlu0 %1483
        %v1485 = vrcp.pop %v1481
        %v1486 = vrcp.pop %v1484
        %v1487 = vmul.f32 %v1476, %v1485
        %v1488 = vmul.f32 %v1478, %v1486
        %v1489 = vpack.c.bf16 %v1487, %v1487
        %v1490 = vpack.c.bf16 %v1488, %v1488
        %1491 = vrot.lane.b32.xlu0 %v1154, 120
        %v1492 = vpop.permute.xlu0 %1491
        %v1494 = vsel %vm1157, %v1489, 0
        %v1497 = vsel %vm1277, %v1492, 0
        %1499 = vmatprep.subr.bf16.mxu0 0
        %1500 = vmatpush1.bf16.msra.mxu0 %v1497
        %1501 = vmatprep.subr.bf16.mxu0 0
        %1502 = vmatpush1.bf16.msra.mxu0 0
        %1503 = vmatprep.subr.bf16.mxu0 0
        %1504 = vmatpush1.bf16.msra.mxu0 0
        %1505 = vmatprep.subr.bf16.mxu0 0
        %1506 = vmatpush1.bf16.msra.mxu0 0
        %1507 = vmatprep.subr.bf16.mxu0 0
        %1508 = vmatpush1.bf16.msra.mxu0 0
        %1509 = vmatprep.subr.bf16.mxu0 0
        %1510 = vmatpush1.bf16.msra.mxu0 0
        %1511 = vmatprep.subr.bf16.mxu0 0
        %1512 = vmatpush1.bf16.msra.mxu0 0
        %1513 = vmatprep.subr.bf16.mxu0 0
        %1514 = vmatpush1.bf16.msra.mxu0 0
        %1515 = vmatprep.subr.bf16.mxu0 0
        %1516 = vmatpush1.bf16.msra.mxu0 0
        %1517 = vmatprep.subr.bf16.mxu0 0
        %1518 = vmatpush1.bf16.msra.mxu0 0
        %1519 = vmatprep.subr.bf16.mxu0 0
        %1520 = vmatpush1.bf16.msra.mxu0 0
        %1521 = vmatprep.subr.bf16.mxu0 0
        %1522 = vmatpush1.bf16.msra.mxu0 0
        %1523 = vmatprep.subr.bf16.mxu0 0
        %1524 = vmatpush1.bf16.msra.mxu0 0
        %1525 = vmatprep.subr.bf16.mxu0 0
        %1526 = vmatpush1.bf16.msra.mxu0 0
        %1527 = vmatprep.subr.bf16.mxu0 0
        %1528 = vmatpush1.bf16.msra.mxu0 0
        %1529 = vmatprep.subr.bf16.mxu0 0
        %1530 = vmatpush1.bf16.msra.mxu0 0
        %1531 = vmatprep.mubr.bf16.mxu0 0
        %1532 = vmatmul.mubr.bf16.gmra.mrb[0].mxu0 %v1494
        %v1533 = vpop.f32.mrb[0].mxu0
        %v1534 = vadd.f32 0.0, %v1533
        %v1535 = vpop.f32.mrb[0].mxu0
        %v1536 = vpop.f32.mrb[0].mxu0
        %v1537 = vpop.f32.mrb[0].mxu0
        %1538 = vdwg.mxu0
        %1539 = vrot.lane.b32.xlu0 %v1155, 120
        %v1540 = vpop.permute.xlu0 %1539
        %v1542 = vsel %vm1157, %v1490, 0
        %v1545 = vsel %vm1277, %v1540, 0
        %1547 = vmatprep.subr.bf16.mxu0 0
        %1548 = vmatpush1.bf16.msra.mxu0 %v1545
        %1549 = vmatprep.subr.bf16.mxu0 0
        %1550 = vmatpush1.bf16.msra.mxu0 0
        %1551 = vmatprep.subr.bf16.mxu0 0
        %1552 = vmatpush1.bf16.msra.mxu0 0
        %1553 = vmatprep.subr.bf16.mxu0 0
        %1554 = vmatpush1.bf16.msra.mxu0 0
        %1555 = vmatprep.subr.bf16.mxu0 0
        %1556 = vmatpush1.bf16.msra.mxu0 0
        %1557 = vmatprep.subr.bf16.mxu0 0
        %1558 = vmatpush1.bf16.msra.mxu0 0
        %1559 = vmatprep.subr.bf16.mxu0 0
        %1560 = vmatpush1.bf16.msra.mxu0 0
        %1561 = vmatprep.subr.bf16.mxu0 0
        %1562 = vmatpush1.bf16.msra.mxu0 0
        %1563 = vmatprep.subr.bf16.mxu0 0
        %1564 = vmatpush1.bf16.msra.mxu0 0
        %1565 = vmatprep.subr.bf16.mxu0 0
        %1566 = vmatpush1.bf16.msra.mxu0 0
        %1567 = vmatprep.subr.bf16.mxu0 0
        %1568 = vmatpush1.bf16.msra.mxu0 0
        %1569 = vmatprep.subr.bf16.mxu0 0
        %1570 = vmatpush1.bf16.msra.mxu0 0
        %1571 = vmatprep.subr.bf16.mxu0 0
        %1572 = vmatpush1.bf16.msra.mxu0 0
        %1573 = vmatprep.subr.bf16.mxu0 0
        %1574 = vmatpush1.bf16.msra.mxu0 0
        %1575 = vmatprep.subr.bf16.mxu0 0
        %1576 = vmatpush1.bf16.msra.mxu0 0
        %1577 = vmatprep.subr.bf16.mxu0 0
        %1578 = vmatpush1.bf16.msra.mxu0 0
        %1579 = vmatprep.mubr.bf16.mxu0 0
        %1580 = vmatmul.mubr.bf16.gmra.mrb[0].mxu0 %v1542
        %v1581 = vpop.f32.mrb[0].mxu0
        %v1582 = vadd.f32 0.0, %v1581
        %v1583 = vpop.f32.mrb[0].mxu0
        %v1584 = vpop.f32.mrb[0].mxu0
        %v1585 = vpop.f32.mrb[0].mxu0
        %1586 = vdwg.mxu0
        %1587 = vrot.lane.b32.xlu0 %v1014, 112
        %v1588 = vpop.permute.xlu0 %1587
        %1589 = vrot.lane.b32.xlu0 %v1084, 112
        %v1590 = vpop.permute.xlu0 %1589
        %v1592 = vsel %vm1157, %v1588, 0
        %v1595 = vsel %vm1157, %v1590, 0
        %1597 = vmatprep.subr.bf16.mxu0 0
        %1598 = vmatpush1.bf16.xpose.msra.mxu0 %v1595
        %1599 = vmatprep.subr.bf16.mxu0 0
        %1600 = vmatpush1.bf16.xpose.msra.mxu0 0
        %1601 = vmatprep.subr.bf16.mxu0 0
        %1602 = vmatpush1.bf16.xpose.msra.mxu0 0
        %1603 = vmatprep.subr.bf16.mxu0 0
        %1604 = vmatpush1.bf16.xpose.msra.mxu0 0
        %1605 = vmatprep.subr.bf16.mxu0 0
        %1606 = vmatpush1.bf16.xpose.msra.mxu0 0
        %1607 = vmatprep.subr.bf16.mxu0 0
        %1608 = vmatpush1.bf16.xpose.msra.mxu0 0
        %1609 = vmatprep.subr.bf16.mxu0 0
        %1610 = vmatpush1.bf16.xpose.msra.mxu0 0
        %1611 = vmatprep.subr.bf16.mxu0 0
        %1612 = vmatpush1.bf16.xpose.msra.mxu0 0
        %1613 = vmatprep.subr.bf16.mxu0 0
        %1614 = vmatpush1.bf16.xpose.msra.mxu0 0
        %1615 = vmatprep.subr.bf16.mxu0 0
        %1616 = vmatpush1.bf16.xpose.msra.mxu0 0
        %1617 = vmatprep.subr.bf16.mxu0 0
        %1618 = vmatpush1.bf16.xpose.msra.mxu0 0
        %1619 = vmatprep.subr.bf16.mxu0 0
        %1620 = vmatpush1.bf16.xpose.msra.mxu0 0
        %1621 = vmatprep.subr.bf16.mxu0 0
        %1622 = vmatpush1.bf16.xpose.msra.mxu0 0
        %1623 = vmatprep.subr.bf16.mxu0 0
        %1624 = vmatpush1.bf16.xpose.msra.mxu0 0
        %1625 = vmatprep.subr.bf16.mxu0 0
        %1626 = vmatpush1.bf16.xpose.msra.mxu0 0
        %1627 = vmatprep.subr.bf16.mxu0 0
        %1628 = vmatpush1.bf16.xpose.msra.mxu0 0
        %1629 = vmatprep.mubr.bf16.mxu0 0
        %1630 = vmatmul.mubr.bf16.gmra.mrb[0].mxu0 %v1592
        %v1631 = vpop.f32.mrb[0].mxu0
        %v1632 = vadd.f32 %v1156, %v1631
        %v1633 = vpop.f32.mrb[0].mxu0
        %v1634 = vpop.f32.mrb[0].mxu0
        %v1635 = vpop.f32.mrb[0].mxu0
        %1636 = vdwg.mxu0
        %1637 = vrot.lane.b32.xlu0 %v1015, 112
        %v1638 = vpop.permute.xlu0 %1637
        %1639 = vrot.lane.b32.xlu0 %v1085, 112
        %v1640 = vpop.permute.xlu0 %1639
        %v1642 = vsel %vm1157, %v1638, 0
        %v1645 = vsel %vm1157, %v1640, 0
        %1647 = vmatprep.subr.bf16.mxu0 0
        %1648 = vmatpush1.bf16.xpose.msra.mxu0 %v1645
        %1649 = vmatprep.subr.bf16.mxu0 0
        %1650 = vmatpush1.bf16.xpose.msra.mxu0 0
        %1651 = vmatprep.subr.bf16.mxu0 0
        %1652 = vmatpush1.bf16.xpose.msra.mxu0 0
        %1653 = vmatprep.subr.bf16.mxu0 0
        %1654 = vmatpush1.bf16.xpose.msra.mxu0 0
        %1655 = vmatprep.subr.bf16.mxu0 0
        %1656 = vmatpush1.bf16.xpose.msra.mxu0 0
        %1657 = vmatprep.subr.bf16.mxu0 0
        %1658 = vmatpush1.bf16.xpose.msra.mxu0 0
        %1659 = vmatprep.subr.bf16.mxu0 0
        %1660 = vmatpush1.bf16.xpose.msra.mxu0 0
        %1661 = vmatprep.subr.bf16.mxu0 0
        %1662 = vmatpush1.bf16.xpose.msra.mxu0 0
        %1663 = vmatprep.subr.bf16.mxu0 0
        %1664 = vmatpush1.bf16.xpose.msra.mxu0 0
        %1665 = vmatprep.subr.bf16.mxu0 0
        %1666 = vmatpush1.bf16.xpose.msra.mxu0 0
        %1667 = vmatprep.subr.bf16.mxu0 0
        %1668 = vmatpush1.bf16.xpose.msra.mxu0 0
        %1669 = vmatprep.subr.bf16.mxu0 0
        %1670 = vmatpush1.bf16.xpose.msra.mxu0 0
        %1671 = vmatprep.subr.bf16.mxu0 0
        %1672 = vmatpush1.bf16.xpose.msra.mxu0 0
        %1673 = vmatprep.subr.bf16.mxu0 0
        %1674 = vmatpush1.bf16.xpose.msra.mxu0 0
        %1675 = vmatprep.subr.bf16.mxu0 0
        %1676 = vmatpush1.bf16.xpose.msra.mxu0 0
        %1677 = vmatprep.subr.bf16.mxu0 0
        %1678 = vmatpush1.bf16.xpose.msra.mxu0 0
        %1679 = vmatprep.mubr.bf16.mxu0 0
        %1680 = vmatmul.mubr.bf16.gmra.mrb[0].mxu0 %v1642
        %v1681 = vpop.f32.mrb[0].mxu0
        %v1682 = vadd.f32 %v1156, %v1681
        %v1683 = vpop.f32.mrb[0].mxu0
        %v1684 = vpop.f32.mrb[0].mxu0
        %v1685 = vpop.f32.mrb[0].mxu0
        %1686 = vdwg.mxu0
        %v1687 = vsel %vm1157, %v1632, -inf
        %1688 = vmax.xlane.f32.xlu0 %v1687
        %v1689 = vpop.xlane.xlu0 %1688
        %v1690 = vsel %vm1157, %v1682, -inf
        %1691 = vmax.xlane.f32.xlu0 %v1690
        %v1692 = vpop.xlane.xlu0 %1691
        %v1693 = vsub.f32 %v1632, %v1689
        %v1694 = vsub.f32 %v1682, %v1692
        %v1695 = vmul.f32 %v1693, 1.442695
        %v1696 = vpow.pop %v1695
        %v1697 = vmul.f32 %v1694, 1.442695
        %v1698 = vpow.pop %v1697
        %v1699 = vsel %vm1157, %v1696, 0.0
        %1700 = vadd.xlane.f32.xlu0 %v1699
        %v1701 = vpop.xlane.xlu0 %1700
        %v1702 = vsel %vm1157, %v1698, 0.0
        %1703 = vadd.xlane.f32.xlu0 %v1702
        %v1704 = vpop.xlane.xlu0 %1703
        %v1705 = vrcp.pop %v1701
        %v1706 = vrcp.pop %v1704
        %v1707 = vmul.f32 %v1696, %v1705
        %v1708 = vmul.f32 %v1698, %v1706
        %v1709 = vpack.c.bf16 %v1707, %v1707
        %v1710 = vpack.c.bf16 %v1708, %v1708
        %1711 = vrot.lane.b32.xlu0 %v1154, 112
        %v1712 = vpop.permute.xlu0 %1711
        %v1714 = vsel %vm1157, %v1709, 0
        %v1717 = vsel %vm1277, %v1712, 0
        %1719 = vmatprep.subr.bf16.mxu0 0
        %1720 = vmatpush1.bf16.msra.mxu0 %v1717
        %1721 = vmatprep.subr.bf16.mxu0 0
        %1722 = vmatpush1.bf16.msra.mxu0 0
        %1723 = vmatprep.subr.bf16.mxu0 0
        %1724 = vmatpush1.bf16.msra.mxu0 0
        %1725 = vmatprep.subr.bf16.mxu0 0
        %1726 = vmatpush1.bf16.msra.mxu0 0
        %1727 = vmatprep.subr.bf16.mxu0 0
        %1728 = vmatpush1.bf16.msra.mxu0 0
        %1729 = vmatprep.subr.bf16.mxu0 0
        %1730 = vmatpush1.bf16.msra.mxu0 0
        %1731 = vmatprep.subr.bf16.mxu0 0
        %1732 = vmatpush1.bf16.msra.mxu0 0
        %1733 = vmatprep.subr.bf16.mxu0 0
        %1734 = vmatpush1.bf16.msra.mxu0 0
        %1735 = vmatprep.subr.bf16.mxu0 0
        %1736 = vmatpush1.bf16.msra.mxu0 0
        %1737 = vmatprep.subr.bf16.mxu0 0
        %1738 = vmatpush1.bf16.msra.mxu0 0
        %1739 = vmatprep.subr.bf16.mxu0 0
        %1740 = vmatpush1.bf16.msra.mxu0 0
        %1741 = vmatprep.subr.bf16.mxu0 0
        %1742 = vmatpush1.bf16.msra.mxu0 0
        %1743 = vmatprep.subr.bf16.mxu0 0
        %1744 = vmatpush1.bf16.msra.mxu0 0
        %1745 = vmatprep.subr.bf16.mxu0 0
        %1746 = vmatpush1.bf16.msra.mxu0 0
        %1747 = vmatprep.subr.bf16.mxu0 0
        %1748 = vmatpush1.bf16.msra.mxu0 0
        %1749 = vmatprep.subr.bf16.mxu0 0
        %1750 = vmatpush1.bf16.msra.mxu0 0
        %1751 = vmatprep.mubr.bf16.mxu0 0
        %1752 = vmatmul.mubr.bf16.gmra.mrb[0].mxu0 %v1714
        %v1753 = vpop.f32.mrb[0].mxu0
        %v1754 = vadd.f32 0.0, %v1753
        %v1755 = vpop.f32.mrb[0].mxu0
        %v1756 = vpop.f32.mrb[0].mxu0
        %v1757 = vpop.f32.mrb[0].mxu0
        %1758 = vdwg.mxu0
        %1759 = vrot.lane.b32.xlu0 %v1155, 112
        %v1760 = vpop.permute.xlu0 %1759
        %v1762 = vsel %vm1157, %v1710, 0
        %v1765 = vsel %vm1277, %v1760, 0
        %1767 = vmatprep.subr.bf16.mxu0 0
        %1768 = vmatpush1.bf16.msra.mxu0 %v1765
        %1769 = vmatprep.subr.bf16.mxu0 0
        %1770 = vmatpush1.bf16.msra.mxu0 0
        %1771 = vmatprep.subr.bf16.mxu0 0
        %1772 = vmatpush1.bf16.msra.mxu0 0
        %1773 = vmatprep.subr.bf16.mxu0 0
        %1774 = vmatpush1.bf16.msra.mxu0 0
        %1775 = vmatprep.subr.bf16.mxu0 0
        %1776 = vmatpush1.bf16.msra.mxu0 0
        %1777 = vmatprep.subr.bf16.mxu0 0
        %1778 = vmatpush1.bf16.msra.mxu0 0
        %1779 = vmatprep.subr.bf16.mxu0 0
        %1780 = vmatpush1.bf16.msra.mxu0 0
        %1781 = vmatprep.subr.bf16.mxu0 0
        %1782 = vmatpush1.bf16.msra.mxu0 0
        %1783 = vmatprep.subr.bf16.mxu0 0
        %1784 = vmatpush1.bf16.msra.mxu0 0
        %1785 = vmatprep.subr.bf16.mxu0 0
        %1786 = vmatpush1.bf16.msra.mxu0 0
        %1787 = vmatprep.subr.bf16.mxu0 0
        %1788 = vmatpush1.bf16.msra.mxu0 0
        %1789 = vmatprep.subr.bf16.mxu0 0
        %1790 = vmatpush1.bf16.msra.mxu0 0
        %1791 = vmatprep.subr.bf16.mxu0 0
        %1792 = vmatpush1.bf16.msra.mxu0 0
        %1793 = vmatprep.subr.bf16.mxu0 0
        %1794 = vmatpush1.bf16.msra.mxu0 0
        %1795 = vmatprep.subr.bf16.mxu0 0
        %1796 = vmatpush1.bf16.msra.mxu0 0
        %1797 = vmatprep.subr.bf16.mxu0 0
        %1798 = vmatpush1.bf16.msra.mxu0 0
        %1799 = vmatprep.mubr.bf16.mxu0 0
        %1800 = vmatmul.mubr.bf16.gmra.mrb[0].mxu0 %v1762
        %v1801 = vpop.f32.mrb[0].mxu0
        %v1802 = vadd.f32 0.0, %v1801
        %v1803 = vpop.f32.mrb[0].mxu0
        %v1804 = vpop.f32.mrb[0].mxu0
        %v1805 = vpop.f32.mrb[0].mxu0
        %1806 = vdwg.mxu0
        %1807 = vrot.lane.b32.xlu0 %v1014, 104
        %v1808 = vpop.permute.xlu0 %1807
        %1809 = vrot.lane.b32.xlu0 %v1084, 104
        %v1810 = vpop.permute.xlu0 %1809
        %v1812 = vsel %vm1157, %v1808, 0
        %v1815 = vsel %vm1157, %v1810, 0
        %1817 = vmatprep.subr.bf16.mxu0 0
        %1818 = vmatpush1.bf16.xpose.msra.mxu0 %v1815
        %1819 = vmatprep.subr.bf16.mxu0 0
        %1820 = vmatpush1.bf16.xpose.msra.mxu0 0
        %1821 = vmatprep.subr.bf16.mxu0 0
        %1822 = vmatpush1.bf16.xpose.msra.mxu0 0
        %1823 = vmatprep.subr.bf16.mxu0 0
        %1824 = vmatpush1.bf16.xpose.msra.mxu0 0
        %1825 = vmatprep.subr.bf16.mxu0 0
        %1826 = vmatpush1.bf16.xpose.msra.mxu0 0
        %1827 = vmatprep.subr.bf16.mxu0 0
        %1828 = vmatpush1.bf16.xpose.msra.mxu0 0
        %1829 = vmatprep.subr.bf16.mxu0 0
        %1830 = vmatpush1.bf16.xpose.msra.mxu0 0
        %1831 = vmatprep.subr.bf16.mxu0 0
        %1832 = vmatpush1.bf16.xpose.msra.mxu0 0
        %1833 = vmatprep.subr.bf16.mxu0 0
        %1834 = vmatpush1.bf16.xpose.msra.mxu0 0
        %1835 = vmatprep.subr.bf16.mxu0 0
        %1836 = vmatpush1.bf16.xpose.msra.mxu0 0
        %1837 = vmatprep.subr.bf16.mxu0 0
        %1838 = vmatpush1.bf16.xpose.msra.mxu0 0
        %1839 = vmatprep.subr.bf16.mxu0 0
        %1840 = vmatpush1.bf16.xpose.msra.mxu0 0
        %1841 = vmatprep.subr.bf16.mxu0 0
        %1842 = vmatpush1.bf16.xpose.msra.mxu0 0
        %1843 = vmatprep.subr.bf16.mxu0 0
        %1844 = vmatpush1.bf16.xpose.msra.mxu0 0
        %1845 = vmatprep.subr.bf16.mxu0 0
        %1846 = vmatpush1.bf16.xpose.msra.mxu0 0
        %1847 = vmatprep.subr.bf16.mxu0 0
        %1848 = vmatpush1.bf16.xpose.msra.mxu0 0
        %1849 = vmatprep.mubr.bf16.mxu0 0
        %1850 = vmatmul.mubr.bf16.gmra.mrb[0].mxu0 %v1812
        %v1851 = vpop.f32.mrb[0].mxu0
        %v1852 = vadd.f32 %v1156, %v1851
        %v1853 = vpop.f32.mrb[0].mxu0
        %v1854 = vpop.f32.mrb[0].mxu0
        %v1855 = vpop.f32.mrb[0].mxu0
        %1856 = vdwg.mxu0
        %1857 = vrot.lane.b32.xlu0 %v1015, 104
        %v1858 = vpop.permute.xlu0 %1857
        %1859 = vrot.lane.b32.xlu0 %v1085, 104
        %v1860 = vpop.permute.xlu0 %1859
        %v1862 = vsel %vm1157, %v1858, 0
        %v1865 = vsel %vm1157, %v1860, 0
        %1867 = vmatprep.subr.bf16.mxu0 0
        %1868 = vmatpush1.bf16.xpose.msra.mxu0 %v1865
        %1869 = vmatprep.subr.bf16.mxu0 0
        %1870 = vmatpush1.bf16.xpose.msra.mxu0 0
        %1871 = vmatprep.subr.bf16.mxu0 0
        %1872 = vmatpush1.bf16.xpose.msra.mxu0 0
        %1873 = vmatprep.subr.bf16.mxu0 0
        %1874 = vmatpush1.bf16.xpose.msra.mxu0 0
        %1875 = vmatprep.subr.bf16.mxu0 0
        %1876 = vmatpush1.bf16.xpose.msra.mxu0 0
        %1877 = vmatprep.subr.bf16.mxu0 0
        %1878 = vmatpush1.bf16.xpose.msra.mxu0 0
        %1879 = vmatprep.subr.bf16.mxu0 0
        %1880 = vmatpush1.bf16.xpose.msra.mxu0 0
        %1881 = vmatprep.subr.bf16.mxu0 0
        %1882 = vmatpush1.bf16.xpose.msra.mxu0 0
        %1883 = vmatprep.subr.bf16.mxu0 0
        %1884 = vmatpush1.bf16.xpose.msra.mxu0 0
        %1885 = vmatprep.subr.bf16.mxu0 0
        %1886 = vmatpush1.bf16.xpose.msra.mxu0 0
        %1887 = vmatprep.subr.bf16.mxu0 0
        %1888 = vmatpush1.bf16.xpose.msra.mxu0 0
        %1889 = vmatprep.subr.bf16.mxu0 0
        %1890 = vmatpush1.bf16.xpose.msra.mxu0 0
        %1891 = vmatprep.subr.bf16.mxu0 0
        %1892 = vmatpush1.bf16.xpose.msra.mxu0 0
        %1893 = vmatprep.subr.bf16.mxu0 0
        %1894 = vmatpush1.bf16.xpose.msra.mxu0 0
        %1895 = vmatprep.subr.bf16.mxu0 0
        %1896 = vmatpush1.bf16.xpose.msra.mxu0 0
        %1897 = vmatprep.subr.bf16.mxu0 0
        %1898 = vmatpush1.bf16.xpose.msra.mxu0 0
        %1899 = vmatprep.mubr.bf16.mxu0 0
        %1900 = vmatmul.mubr.bf16.gmra.mrb[0].mxu0 %v1862
        %v1901 = vpop.f32.mrb[0].mxu0
        %v1902 = vadd.f32 %v1156, %v1901
        %v1903 = vpop.f32.mrb[0].mxu0
        %v1904 = vpop.f32.mrb[0].mxu0
        %v1905 = vpop.f32.mrb[0].mxu0
        %1906 = vdwg.mxu0
        %v1907 = vsel %vm1157, %v1852, -inf
        %1908 = vmax.xlane.f32.xlu0 %v1907
        %v1909 = vpop.xlane.xlu0 %1908
        %v1910 = vsel %vm1157, %v1902, -inf
        %1911 = vmax.xlane.f32.xlu0 %v1910
        %v1912 = vpop.xlane.xlu0 %1911
        %v1913 = vsub.f32 %v1852, %v1909
        %v1914 = vsub.f32 %v1902, %v1912
        %v1915 = vmul.f32 %v1913, 1.442695
        %v1916 = vpow.pop %v1915
        %v1917 = vmul.f32 %v1914, 1.442695
        %v1918 = vpow.pop %v1917
        %v1919 = vsel %vm1157, %v1916, 0.0
        %1920 = vadd.xlane.f32.xlu0 %v1919
        %v1921 = vpop.xlane.xlu0 %1920
        %v1922 = vsel %vm1157, %v1918, 0.0
        %1923 = vadd.xlane.f32.xlu0 %v1922
        %v1924 = vpop.xlane.xlu0 %1923
        %v1925 = vrcp.pop %v1921
        %v1926 = vrcp.pop %v1924
        %v1927 = vmul.f32 %v1916, %v1925
        %v1928 = vmul.f32 %v1918, %v1926
        %v1929 = vpack.c.bf16 %v1927, %v1927
        %v1930 = vpack.c.bf16 %v1928, %v1928
        %1931 = vrot.lane.b32.xlu0 %v1154, 104
        %v1932 = vpop.permute.xlu0 %1931
        %v1934 = vsel %vm1157, %v1929, 0
        %v1937 = vsel %vm1277, %v1932, 0
        %1939 = vmatprep.subr.bf16.mxu0 0
        %1940 = vmatpush1.bf16.msra.mxu0 %v1937
        %1941 = vmatprep.subr.bf16.mxu0 0
        %1942 = vmatpush1.bf16.msra.mxu0 0
        %1943 = vmatprep.subr.bf16.mxu0 0
        %1944 = vmatpush1.bf16.msra.mxu0 0
        %1945 = vmatprep.subr.bf16.mxu0 0
        %1946 = vmatpush1.bf16.msra.mxu0 0
        %1947 = vmatprep.subr.bf16.mxu0 0
        %1948 = vmatpush1.bf16.msra.mxu0 0
        %1949 = vmatprep.subr.bf16.mxu0 0
        %1950 = vmatpush1.bf16.msra.mxu0 0
        %1951 = vmatprep.subr.bf16.mxu0 0
        %1952 = vmatpush1.bf16.msra.mxu0 0
        %1953 = vmatprep.subr.bf16.mxu0 0
        %1954 = vmatpush1.bf16.msra.mxu0 0
        %1955 = vmatprep.subr.bf16.mxu0 0
        %1956 = vmatpush1.bf16.msra.mxu0 0
        %1957 = vmatprep.subr.bf16.mxu0 0
        %1958 = vmatpush1.bf16.msra.mxu0 0
        %1959 = vmatprep.subr.bf16.mxu0 0
        %1960 = vmatpush1.bf16.msra.mxu0 0
        %1961 = vmatprep.subr.bf16.mxu0 0
        %1962 = vmatpush1.bf16.msra.mxu0 0
        %1963 = vmatprep.subr.bf16.mxu0 0
        %1964 = vmatpush1.bf16.msra.mxu0 0
        %1965 = vmatprep.subr.bf16.mxu0 0
        %1966 = vmatpush1.bf16.msra.mxu0 0
        %1967 = vmatprep.subr.bf16.mxu0 0
        %1968 = vmatpush1.bf16.msra.mxu0 0
        %1969 = vmatprep.subr.bf16.mxu0 0
        %1970 = vmatpush1.bf16.msra.mxu0 0
        %1971 = vmatprep.mubr.bf16.mxu0 0
        %1972 = vmatmul.mubr.bf16.gmra.mrb[0].mxu0 %v1934
        %v1973 = vpop.f32.mrb[0].mxu0
        %v1974 = vadd.f32 0.0, %v1973
        %v1975 = vpop.f32.mrb[0].mxu0
        %v1976 = vpop.f32.mrb[0].mxu0
        %v1977 = vpop.f32.mrb[0].mxu0
        %1978 = vdwg.mxu0
        %1979 = vrot.lane.b32.xlu0 %v1155, 104
        %v1980 = vpop.permute.xlu0 %1979
        %v1982 = vsel %vm1157, %v1930, 0
        %v1985 = vsel %vm1277, %v1980, 0
        %1987 = vmatprep.subr.bf16.mxu0 0
        %1988 = vmatpush1.bf16.msra.mxu0 %v1985
        %1989 = vmatprep.subr.bf16.mxu0 0
        %1990 = vmatpush1.bf16.msra.mxu0 0
        %1991 = vmatprep.subr.bf16.mxu0 0
        %1992 = vmatpush1.bf16.msra.mxu0 0
        %1993 = vmatprep.subr.bf16.mxu0 0
        %1994 = vmatpush1.bf16.msra.mxu0 0
        %1995 = vmatprep.subr.bf16.mxu0 0
        %1996 = vmatpush1.bf16.msra.mxu0 0
        %1997 = vmatprep.subr.bf16.mxu0 0
        %1998 = vmatpush1.bf16.msra.mxu0 0
        %1999 = vmatprep.subr.bf16.mxu0 0
        %2000 = vmatpush1.bf16.msra.mxu0 0
        %2001 = vmatprep.subr.bf16.mxu0 0
        %2002 = vmatpush1.bf16.msra.mxu0 0
        %2003 = vmatprep.subr.bf16.mxu0 0
        %2004 = vmatpush1.bf16.msra.mxu0 0
        %2005 = vmatprep.subr.bf16.mxu0 0
        %2006 = vmatpush1.bf16.msra.mxu0 0
        %2007 = vmatprep.subr.bf16.mxu0 0
        %2008 = vmatpush1.bf16.msra.mxu0 0
        %2009 = vmatprep.subr.bf16.mxu0 0
        %2010 = vmatpush1.bf16.msra.mxu0 0
        %2011 = vmatprep.subr.bf16.mxu0 0
        %2012 = vmatpush1.bf16.msra.mxu0 0
        %2013 = vmatprep.subr.bf16.mxu0 0
        %2014 = vmatpush1.bf16.msra.mxu0 0
        %2015 = vmatprep.subr.bf16.mxu0 0
        %2016 = vmatpush1.bf16.msra.mxu0 0
        %2017 = vmatprep.subr.bf16.mxu0 0
        %2018 = vmatpush1.bf16.msra.mxu0 0
        %2019 = vmatprep.mubr.bf16.mxu0 0
        %2020 = vmatmul.mubr.bf16.gmra.mrb[0].mxu0 %v1982
        %v2021 = vpop.f32.mrb[0].mxu0
        %v2022 = vadd.f32 0.0, %v2021
        %v2023 = vpop.f32.mrb[0].mxu0
        %v2024 = vpop.f32.mrb[0].mxu0
        %v2025 = vpop.f32.mrb[0].mxu0
        %2026 = vdwg.mxu0
        %2029 = vrot.lane.b32.xlu0 %v1534, 8
        %v2030 = vpop.permute.xlu0 %2029
        %2031 = vrot.lane.b32.xlu0 %v1582, 8
        %v2032 = vpop.permute.xlu0 %2031
        %2037 = vrot.lane.b32.xlu0 %v1754, 16
        %v2038 = vpop.permute.xlu0 %2037
        %2039 = vrot.lane.b32.xlu0 %v1802, 16
        %v2040 = vpop.permute.xlu0 %2039
        %2045 = vrot.lane.b32.xlu0 %v1974, 24
        %v2046 = vpop.permute.xlu0 %2045
        %2047 = vrot.lane.b32.xlu0 %v2022, 24
        %v2048 = vpop.permute.xlu0 %2047
        %v2051 = vsel %vm1157, %v1316, %v2030
        %v2052 = vsel %vm1157, %v1362, %v2032
        %vm2053 = vcmask 130048
        %v2054 = vsel %vm2053, %v2051, %v2038
        %v2055 = vsel %vm2053, %v2052, %v2040
        %vm2056 = vcmask 195584
        %v2057 = vsel %vm2056, %v2054, %v2046
        %v2058 = vsel %vm2056, %v2055, %v2048
        %v2059 = vpack.c.bf16 %v2058, %v2057
        %v2060 = vld [vmem:[%s727] sm:$0xf]
        %v2061 = vld [vmem:[%s727 + $0x4] sm:$0xf]
        %v2062 = vld [vmem:[%s727 + $0x8] sm:$0xf]
        %v2063 = vld [vmem:[%s727 + $0xc] sm:$0xf]
        %v2064 = vld [vmem:[%s867] sm:$0x1]
        %v2066 = vlaneseq
        %v2067 = vshrl.u32 %v2066, 7
        %v2068 = vsub.s32 0, %v2067
        %v2069 = vrot.slane %v2064, %v2068
        %v2075 = vunpack.c.l.b16 %v2060
        %v2076 = vunpack.c.l.b16 %v2061
        %v2077 = vunpack.c.l.b16 %v2062
        %v2078 = vunpack.c.l.b16 %v2063
        %v2079 = vpack.c.b16 %v2076, %v2075
        %v2080 = vpack.c.b16 %v2078, %v2077
        %v2084 = vsel %vm965, %v2059, 0
        %2086 = vmatprep.subr.bf16.mxu0 0
        %2087 = vmatpush1.bf16.msra.mxu0 %v2079
        %2088 = vmatprep.subr.bf16.mxu0 0
        %2089 = vmatpush1.bf16.msra.mxu0 %v2080
        %2090 = vmatprep.subr.bf16.mxu0 0
        %2091 = vmatpush1.bf16.msra.mxu0 0
        %2092 = vmatprep.subr.bf16.mxu0 0
        %2093 = vmatpush1.bf16.msra.mxu0 0
        %2094 = vmatprep.subr.bf16.mxu0 0
        %2095 = vmatpush1.bf16.msra.mxu0 0
        %2096 = vmatprep.subr.bf16.mxu0 0
        %2097 = vmatpush1.bf16.msra.mxu0 0
        %2098 = vmatprep.subr.bf16.mxu0 0
        %2099 = vmatpush1.bf16.msra.mxu0 0
        %2100 = vmatprep.subr.bf16.mxu0 0
        %2101 = vmatpush1.bf16.msra.mxu0 0
        %2102 = vmatprep.subr.bf16.mxu0 0
        %2103 = vmatpush1.bf16.msra.mxu0 0
        %2104 = vmatprep.subr.bf16.mxu0 0
        %2105 = vmatpush1.bf16.msra.mxu0 0
        %2106 = vmatprep.subr.bf16.mxu0 0
        %2107 = vmatpush1.bf16.msra.mxu0 0
        %2108 = vmatprep.subr.bf16.mxu0 0
        %2109 = vmatpush1.bf16.msra.mxu0 0
        %2110 = vmatprep.subr.bf16.mxu0 0
        %2111 = vmatpush1.bf16.msra.mxu0 0
        %2112 = vmatprep.subr.bf16.mxu0 0
        %2113 = vmatpush1.bf16.msra.mxu0 0
        %2114 = vmatprep.subr.bf16.mxu0 0
        %2115 = vmatpush1.bf16.msra.mxu0 0
        %2116 = vmatprep.subr.bf16.mxu0 0
        %2117 = vmatpush1.bf16.msra.mxu0 0
        %2118 = vmatprep.mubr.bf16.mxu0 0
        %2119 = vmatmul.mubr.bf16.gmra.mrb[0].mxu0 %v2084
        %v2120 = vpop.f32.mrb[0].mxu0
        %v2121 = vadd.f32 %v2069, %v2120
        %v2122 = vpop.f32.mrb[0].mxu0
        %v2123 = vpop.f32.mrb[0].mxu0
        %v2124 = vadd.f32 %v2069, %v2123
        %v2125 = vpop.f32.mrb[0].mxu0
        %2126 = vdwg.mxu0
        %v2127 = vadd.f32 %v939, %v2121
        %v2128 = vadd.f32 %v940, %v2124
        %v2129 = vld [vmem:[%s870] sm:$0x1]
        %v2130 = vld [vmem:[%s873] sm:$0x1]
        %v2131 = vsel %vm965, %v2127, 0.0
        %2132 = vadd.xlane.f32.xlu0 %v2131
        %v2133 = vpop.xlane.xlu0 %2132
        %v2134 = vsel %vm965, %v2128, 0.0
        %2135 = vadd.xlane.f32.xlu0 %v2134
        %v2136 = vpop.xlane.xlu0 %2135
        %v2137 = vrcp.pop 32.0
        %v2138 = vmul.f32 %v2133, %v2137
        %v2139 = vmul.f32 %v2136, %v2137
        %v2140 = vsub.f32 %v2127, %v2138
        %v2141 = vsub.f32 %v2128, %v2139
        %v2142 = vmul.f32 %v2140, %v2140
        %v2143 = vmul.f32 %v2141, %v2141
        %v2144 = vsel %vm965, %v2142, 0.0
        %2145 = vadd.xlane.f32.xlu0 %v2144
        %v2146 = vpop.xlane.xlu0 %2145
        %v2147 = vsel %vm965, %v2143, 0.0
        %2148 = vadd.xlane.f32.xlu0 %v2147
        %v2149 = vpop.xlane.xlu0 %2148
        %v2150 = vmul.f32 %v2146, %v2137
        %v2151 = vmul.f32 %v2149, %v2137
        %v2152 = vadd.f32 %v2150, 1e-05
        %v2153 = vadd.f32 %v2151, 1e-05
        %v2154 = vrsqrt.pop %v2152
        %v2155 = vrsqrt.pop %v2153
        %v2156 = vmul.f32 %v2140, %v2154
        %v2157 = vmul.f32 %v2141, %v2155
        %v2159 = vlaneseq
        %v2160 = vshrl.u32 %v2159, 7
        %v2161 = vsub.s32 0, %v2160
        %v2162 = vrot.slane %v2129, %v2161
        %v2164 = vmul.f32 %v2156, %v2162
        %v2165 = vmul.f32 %v2157, %v2162
        %v2167 = vlaneseq
        %v2168 = vshrl.u32 %v2167, 7
        %v2169 = vsub.s32 0, %v2168
        %v2170 = vrot.slane %v2130, %v2169
        %v2172 = vadd.f32 %v2164, %v2170
        %v2173 = vadd.f32 %v2165, %v2170
        %v2174 = vpack.c.bf16 %v2173, %v2172
        %v2175 = vld [vmem:[%s736] sm:$0xf]
        %v2176 = vld [vmem:[%s736 + $0x4] sm:$0xf]
        %v2177 = vld [vmem:[%s736 + $0x8] sm:$0xf]
        %v2178 = vld [vmem:[%s736 + $0xc] sm:$0xf]
        %v2179 = vld [vmem:[%s876] sm:$0x1]
        %v2181 = vlaneseq
        %v2182 = vshrl.u32 %v2181, 7
        %v2183 = vsub.s32 0, %v2182
        %v2184 = vrot.slane %v2179, %v2183
        %v2190 = vunpack.c.l.b16 %v2175
        %v2191 = vunpack.c.l.b16 %v2176
        %v2192 = vunpack.c.l.b16 %v2177
        %v2193 = vunpack.c.l.b16 %v2178
        %v2194 = vpack.c.b16 %v2191, %v2190
        %v2195 = vpack.c.b16 %v2193, %v2192
        %v2199 = vsel %vm965, %v2174, 0
        %2201 = vmatprep.subr.bf16.mxu0 0
        %2202 = vmatpush1.bf16.msra.mxu0 %v2194
        %2203 = vmatprep.subr.bf16.mxu0 0
        %2204 = vmatpush1.bf16.msra.mxu0 %v2195
        %2205 = vmatprep.subr.bf16.mxu0 0
        %2206 = vmatpush1.bf16.msra.mxu0 0
        %2207 = vmatprep.subr.bf16.mxu0 0
        %2208 = vmatpush1.bf16.msra.mxu0 0
        %2209 = vmatprep.subr.bf16.mxu0 0
        %2210 = vmatpush1.bf16.msra.mxu0 0
        %2211 = vmatprep.subr.bf16.mxu0 0
        %2212 = vmatpush1.bf16.msra.mxu0 0
        %2213 = vmatprep.subr.bf16.mxu0 0
        %2214 = vmatpush1.bf16.msra.mxu0 0
        %2215 = vmatprep.subr.bf16.mxu0 0
        %2216 = vmatpush1.bf16.msra.mxu0 0
        %2217 = vmatprep.subr.bf16.mxu0 0
        %2218 = vmatpush1.bf16.msra.mxu0 0
        %2219 = vmatprep.subr.bf16.mxu0 0
        %2220 = vmatpush1.bf16.msra.mxu0 0
        %2221 = vmatprep.subr.bf16.mxu0 0
        %2222 = vmatpush1.bf16.msra.mxu0 0
        %2223 = vmatprep.subr.bf16.mxu0 0
        %2224 = vmatpush1.bf16.msra.mxu0 0
        %2225 = vmatprep.subr.bf16.mxu0 0
        %2226 = vmatpush1.bf16.msra.mxu0 0
        %2227 = vmatprep.subr.bf16.mxu0 0
        %2228 = vmatpush1.bf16.msra.mxu0 0
        %2229 = vmatprep.subr.bf16.mxu0 0
        %2230 = vmatpush1.bf16.msra.mxu0 0
        %2231 = vmatprep.subr.bf16.mxu0 0
        %2232 = vmatpush1.bf16.msra.mxu0 0
        %2233 = vmatprep.mubr.bf16.mxu0 0
        %2234 = vmatmul.mubr.bf16.gmra.mrb[0].mxu0 %v2199
        %v2235 = vpop.f32.mrb[0].mxu0
        %v2236 = vadd.f32 %v2184, %v2235
        %v2237 = vpop.f32.mrb[0].mxu0
        %v2238 = vpop.f32.mrb[0].mxu0
        %v2239 = vadd.f32 %v2184, %v2238
        %v2240 = vpop.f32.mrb[0].mxu0
        %2241 = vdwg.mxu0
        %v2242 = vmax.f32 %v2236, 0.0
        %v2243 = vmax.f32 %v2239, 0.0
        %v2244 = vpack.c.bf16 %v2243, %v2242
        %v2245 = vld [vmem:[%s881] sm:$0xf]
        %v2246 = vld [vmem:[%s881 + $0x4] sm:$0xf]
        %v2247 = vld [vmem:[%s881 + $0x8] sm:$0xf]
        %v2248 = vld [vmem:[%s881 + $0xc] sm:$0xf]
        %v2249 = vld [vmem:[%s881 + $0x10] sm:$0xf]
        %v2250 = vld [vmem:[%s881 + $0x14] sm:$0xf]
        %v2251 = vld [vmem:[%s881 + $0x18] sm:$0xf]
        %v2252 = vld [vmem:[%s881 + $0x1c] sm:$0xf]
        %v2253 = vld [vmem:[%s884] sm:$0x1]
        %v2255 = vlaneseq
        %v2256 = vshrl.u32 %v2255, 7
        %v2257 = vsub.s32 0, %v2256
        %v2258 = vrot.slane %v2253, %v2257
        %v2268 = vunpack.c.l.b16 %v2245
        %v2269 = vunpack.c.l.b16 %v2246
        %v2270 = vunpack.c.l.b16 %v2247
        %v2271 = vunpack.c.l.b16 %v2248
        %v2272 = vunpack.c.l.b16 %v2249
        %v2273 = vunpack.c.l.b16 %v2250
        %v2274 = vunpack.c.l.b16 %v2251
        %v2275 = vunpack.c.l.b16 %v2252
        %v2276 = vpack.c.b16 %v2269, %v2268
        %v2277 = vpack.c.b16 %v2271, %v2270
        %v2278 = vpack.c.b16 %v2273, %v2272
        %v2279 = vpack.c.b16 %v2275, %v2274
        %vm2284 = vcmask 523264
        %v2286 = vsel %vm2284, %v2244, 0
        %2288 = vmatprep.subr.bf16.mxu0 0
        %2289 = vmatpush1.bf16.msra.mxu0 %v2276
        %2290 = vmatprep.subr.bf16.mxu0 0
        %2291 = vmatpush1.bf16.msra.mxu0 %v2277
        %2292 = vmatprep.subr.bf16.mxu0 0
        %2293 = vmatpush1.bf16.msra.mxu0 %v2278
        %2294 = vmatprep.subr.bf16.mxu0 0
        %2295 = vmatpush1.bf16.msra.mxu0 %v2279
        %2296 = vmatprep.subr.bf16.mxu0 0
        %2297 = vmatpush1.bf16.msra.mxu0 0
        %2298 = vmatprep.subr.bf16.mxu0 0
        %2299 = vmatpush1.bf16.msra.mxu0 0
        %2300 = vmatprep.subr.bf16.mxu0 0
        %2301 = vmatpush1.bf16.msra.mxu0 0
        %2302 = vmatprep.subr.bf16.mxu0 0
        %2303 = vmatpush1.bf16.msra.mxu0 0
        %2304 = vmatprep.subr.bf16.mxu0 0
        %2305 = vmatpush1.bf16.msra.mxu0 0
        %2306 = vmatprep.subr.bf16.mxu0 0
        %2307 = vmatpush1.bf16.msra.mxu0 0
        %2308 = vmatprep.subr.bf16.mxu0 0
        %2309 = vmatpush1.bf16.msra.mxu0 0
        %2310 = vmatprep.subr.bf16.mxu0 0
        %2311 = vmatpush1.bf16.msra.mxu0 0
        %2312 = vmatprep.subr.bf16.mxu0 0
        %2313 = vmatpush1.bf16.msra.mxu0 0
        %2314 = vmatprep.subr.bf16.mxu0 0
        %2315 = vmatpush1.bf16.msra.mxu0 0
        %2316 = vmatprep.subr.bf16.mxu0 0
        %2317 = vmatpush1.bf16.msra.mxu0 0
        %2318 = vmatprep.subr.bf16.mxu0 0
        %2319 = vmatpush1.bf16.msra.mxu0 0
        %2320 = vmatprep.mubr.bf16.mxu0 0
        %2321 = vmatmul.mubr.bf16.gmra.mrb[0].mxu0 %v2286
        %v2322 = vpop.f32.mrb[0].mxu0
        %v2323 = vadd.f32 %v2258, %v2322
        %v2324 = vpop.f32.mrb[0].mxu0
        %v2325 = vpop.f32.mrb[0].mxu0
        %v2326 = vadd.f32 %v2258, %v2325
        %v2327 = vpop.f32.mrb[0].mxu0
        %2328 = vdwg.mxu0
        %v2329 = vadd.f32 %v2172, %v2323
        %v2330 = vadd.f32 %v2173, %v2326
        %v2331 = vld [vmem:[%s887] sm:$0x1]
        %v2332 = vld [vmem:[%s890] sm:$0x1]
        %v2333 = vsel %vm965, %v2329, 0.0
        %2334 = vadd.xlane.f32.xlu0 %v2333
        %v2335 = vpop.xlane.xlu0 %2334
        %v2336 = vsel %vm965, %v2330, 0.0
        %2337 = vadd.xlane.f32.xlu0 %v2336
        %v2338 = vpop.xlane.xlu0 %2337
        %v2339 = vmul.f32 %v2335, %v2137
        %v2340 = vmul.f32 %v2338, %v2137
        %v2341 = vsub.f32 %v2329, %v2339
        %v2342 = vsub.f32 %v2330, %v2340
        %v2343 = vmul.f32 %v2341, %v2341
        %v2344 = vmul.f32 %v2342, %v2342
        %v2345 = vsel %vm965, %v2343, 0.0
        %2346 = vadd.xlane.f32.xlu0 %v2345
        %v2347 = vpop.xlane.xlu0 %2346
        %v2348 = vsel %vm965, %v2344, 0.0
        %2349 = vadd.xlane.f32.xlu0 %v2348
        %v2350 = vpop.xlane.xlu0 %2349
        %v2351 = vmul.f32 %v2347, %v2137
        %v2352 = vmul.f32 %v2350, %v2137
        %v2353 = vadd.f32 %v2351, 1e-05
        %v2354 = vadd.f32 %v2352, 1e-05
        %v2355 = vrsqrt.pop %v2353
        %v2356 = vrsqrt.pop %v2354
        %v2357 = vmul.f32 %v2341, %v2355
        %v2358 = vmul.f32 %v2342, %v2356
        %v2360 = vlaneseq
        %v2361 = vshrl.u32 %v2360, 7
        %v2362 = vsub.s32 0, %v2361
        %v2363 = vrot.slane %v2331, %v2362
        %v2365 = vmul.f32 %v2357, %v2363
        %v2366 = vmul.f32 %v2358, %v2363
        %v2368 = vlaneseq
        %v2369 = vshrl.u32 %v2368, 7
        %v2370 = vsub.s32 0, %v2369
        %v2371 = vrot.slane %v2332, %v2370
        %v2373 = vadd.f32 %v2365, %v2371
        %v2374 = vadd.f32 %v2366, %v2371
        %2375 = vst.msk [vmem:[#allocation9] sm:$0xff] %vm965, %v2373
        %2376 = vst.msk [vmem:[#allocation9 + $0x8] sm:$0xff] %vm965, %v2374
        // Predicated region
        $region117: #{tpu_custom_call.1} parent=95 // pred_check
          %p2377 = pneg %p525
        $region118: #{tpu_custom_call.1} parent=95 // pred_check_branch
          %2379 = sbr.rel (%p2377) target = $region120
        $region119: #{tpu_custom_call.1} parent=95 // pred_region
          %s2381 = ssub.s32 256, 256
          %2382 = vsyncadd [#allocation4], %s2381
          %s2383 = sshll.u32 [#allocation9], 4
          %s2384 = int_to_ptr.vmem [resolvable:$true] %s2383
          %2389 = dma.vmem_to_hbm [thread:$0]  %s2384, 256, %s19, [#allocation4], 128, 128, 8
        $region120: #{tpu_custom_call.1} parent=95 // pred_fallthru
          _
        // Predicated region
        $region121: #{tpu_custom_call.1} parent=95 // pred_check
          %p2390 = pneg %p525
        $region122: #{tpu_custom_call.1} parent=95 // pred_check_branch
          %2392 = sbr.rel (%p2390) target = $region124
        $region123: #{tpu_custom_call.1} parent=95 // pred_region
          %2393 = dma.done [#allocation4], 256
        $region124: #{tpu_custom_call.1} parent=95 // pred_fallthru
          _
      $region96: #{tpu_custom_call.1} parent=5 // pred_fallthru
        _
      %p2394 = scmp.le.s32.totalorder 2, %s28
      // Predicated region
      $region125: #{tpu_custom_call.1} parent=5 // pred_check
        %p2395 = pneg %p2394
      $region126: #{tpu_custom_call.1} parent=5 // pred_check_branch
        %2397 = sbr.rel (%p2395) target = $region128
      $region127: #{tpu_custom_call.1} parent=5 // pred_region
        %s2398 = ssub.s32 %s28, 2
      $region128: #{tpu_custom_call.1} parent=5 // pred_fallthru
        _
    $region6: #{tpu_custom_call.1} parent=1 // loop_footer
      %s32 = sadd.s32 1, %s28
    $region7: #{tpu_custom_call.1} parent=1 // loop_footer_branch
      %27 = sbr.rel target = $region3
    $region8: #{tpu_custom_call.1} parent=1 // loop_exit
      _
    %2399 = vsyncpa [#allocation3], 1
    %s2400 = scalar_lea.sflag [#allocation3], 1
    %2401 = vsyncpa %s2400, 1
    %2402 = vsyncpa [#allocation6], 1
    %2403 = vsyncpa [#allocation4], 1
    %s2404 = scalar_lea.sflag [#allocation4], 1
    %2405 = vsyncpa %s2404, 1

</llo_original>
